<compile_context>
chip_gen: v7x
topology: tpu7x:2x2x1
jax: 0.10.0
libtpu: 0.0.40
codegen_flags: <defaults>
</compile_context>

<pallas_src>
import functools

import jax
import jax.numpy as jnp
from jax import lax
from jax.experimental import pallas as pl
from jax.experimental.pallas import tpu as pltpu

# ---- config (small, consistent with the module) ----
HIDDEN = 32
N_HEADS = 4
HEAD_DIM = HIDDEN // N_HEADS
INNER = 4 * HIDDEN            # config.n_inner defaults to 4*hidden_size
LN_EPS = 1e-5                 # config.layer_norm_epsilon
MASKED_BIAS = -10000.0        # GPT2Attention.masked_bias


def _gelu_new(x):
    # HF "gelu_new" (GPT-2 default activation_function); x*x*x stays on the VALU
    # instead of lowering pow(., 3.0) through exp/log on the EUP.
    return 0.5 * x * (1.0 + jnp.tanh(
        jnp.sqrt(2.0 / jnp.pi) * (x + 0.044715 * (x * x * x))))


def _layernorm(x, w, b, eps):
    mean = jnp.mean(x, axis=-1, keepdims=True)
    var = jnp.mean(jnp.square(x - mean), axis=-1, keepdims=True)
    return (x - mean) * lax.rsqrt(var + eps) * w + b


# ----------------------- fused attention-block kernel -----------------------

def attn_block_kernel(x_ref, ln1w_ref, ln1b_ref, wqkv_ref, bqkv_ref,
                      wproj_ref, bproj_ref, o_ref, *, eps, n_heads, head_dim):
    # one batch element per grid step: x_ref is (1, S, H)
    x = x_ref[0].astype(jnp.float32)                       # (S, H) residual
    S, H = x.shape

    # LayerNorm 1 (broadcasts hoisted: loaded once per grid step)
    ln_w = ln1w_ref[...].astype(jnp.float32)               # (1, H)
    ln_b = ln1b_ref[...].astype(jnp.float32)
    h = _layernorm(x, ln_w, ln_b, eps)                     # (S, H)

    # Fused QKV projection (single lane-dense matmul)
    qkv = jnp.dot(h, wqkv_ref[...].astype(jnp.float32),
                  preferred_element_type=jnp.float32)
    qkv = qkv + bqkv_ref[...].astype(jnp.float32)          # (S, 3H)

    # causal mask, hoisted out of the head loop
    qi = lax.broadcasted_iota(jnp.int32, (S, S), 0)
    ki = lax.broadcasted_iota(jnp.int32, (S, S), 1)
    causal = ki <= qi

    scale = 1.0 / float(head_dim) ** 0.5                   # scale_attn_weights=True
    wproj = wproj_ref[...].astype(jnp.float32)             # (H, H)

    # per-head attention; context folded directly into the output projection:
    #   concat_h(ctx_h) @ Wproj == sum_h ctx_h @ Wproj[h*Dh:(h+1)*Dh, :]
    acc = jnp.zeros((S, H), jnp.float32)
    for hd in range(n_heads):
        lo = hd * head_dim
        hi = lo + head_dim
        q = qkv[:, lo:hi] * scale                          # scale folded into q
        k = qkv[:, H + lo:H + hi]
        v = qkv[:, 2 * H + lo:2 * H + hi]
        # NT contraction on the last dims -> no explicit transpose of k
        s = lax.dot_general(q, k, (((1,), (1,)), ((), ())),
                            preferred_element_type=jnp.float32)     # (S, S)
        s = jnp.where(causal, s, jnp.float32(MASKED_BIAS))
        s = s - jnp.max(s, axis=-1, keepdims=True)
        p = jnp.exp(s)
        p = p / jnp.sum(p, axis=-1, keepdims=True)          # softmax (f32)
        ctx = jnp.dot(p, v, preferred_element_type=jnp.float32)      # (S, Dh)
        acc = acc + jnp.dot(ctx, wproj[lo:hi, :],
                            preferred_element_type=jnp.float32)      # (S, H)

    attn_out = acc + bproj_ref[...].astype(jnp.float32)
    o_ref[0] = (x + attn_out).astype(o_ref.dtype)          # residual fused


# ----------------------- fused MLP-block kernel -----------------------

def mlp_block_kernel(h_ref, ln2w_ref, ln2b_ref, wfc_ref, bfc_ref,
                     wproj_ref, bproj_ref, o_ref, *, eps):
    h = h_ref[...].astype(jnp.float32)                     # (tm, H) residual
    ln_w = ln2w_ref[...].astype(jnp.float32)
    ln_b = ln2b_ref[...].astype(jnp.float32)
    hn = _layernorm(h, ln_w, ln_b, eps)

    ff = jnp.dot(hn, wfc_ref[...].astype(jnp.float32),
                 preferred_element_type=jnp.float32)
    ff = _gelu_new(ff + bfc_ref[...].astype(jnp.float32))  # (tm, 4H)

    out = jnp.dot(ff, wproj_ref[...].astype(jnp.float32),
                  preferred_element_type=jnp.float32)
    out = out + bproj_ref[...].astype(jnp.float32)
    o_ref[...] = (h + out).astype(o_ref.dtype)             # residual fused


# ----------------------- wrappers -----------------------

def attention_block(x, p):
    """Fused LN1 + causal self-attention + c_proj + residual. x: [B, S, H]."""
    B, S, H = x.shape
    full = lambda shape: pl.BlockSpec(shape, lambda b: (0,) * len(shape))
    return pl.pallas_call(
        functools.partial(attn_block_kernel, eps=LN_EPS,
                          n_heads=N_HEADS, head_dim=HEAD_DIM),
        out_shape=jax.ShapeDtypeStruct((B, S, H), x.dtype),
        grid=(B,),
        in_specs=[
            pl.BlockSpec((1, S, H), lambda b: (b, 0, 0)),   # hidden_states
            full((1, H)), full((1, H)),                     # ln1 gamma/beta
            full((H, 3 * H)), full((1, 3 * H)),             # c_attn W/b
            full((H, H)), full((1, H)),                     # c_proj W/b
        ],
        out_specs=pl.BlockSpec((1, S, H), lambda b: (b, 0, 0)),
        compiler_params=pltpu.CompilerParams(
            dimension_semantics=("parallel",)),
    )(x, p["ln1_w"].reshape(1, -1), p["ln1_b"].reshape(1, -1),
      p["c_attn_w"], p["c_attn_b"].reshape(1, -1),
      p["c_proj_w"], p["c_proj_b"].reshape(1, -1))


def mlp_block(h2d, p, tm=8):
    """Fused LN2 + c_fc + gelu_new + c_proj + residual. h2d: [B*S, H]."""
    M, H = h2d.shape
    tm = min(tm, M)
    assert M % tm == 0, "row count must divide the M tile at toy sizes"
    full = lambda shape: pl.BlockSpec(shape, lambda i: (0,) * len(shape))
    return pl.pallas_call(
        functools.partial(mlp_block_kernel, eps=LN_EPS),
        out_shape=jax.ShapeDtypeStruct((M, H), h2d.dtype),
        grid=(pl.cdiv(M, tm),),
        in_specs=[
            pl.BlockSpec((tm, H), lambda i: (i, 0)),        # hidden_states rows
            full((1, H)), full((1, H)),                     # ln2 gamma/beta
            full((H, INNER)), full((1, INNER)),             # c_fc W/b
            full((INNER, H)), full((1, H)),                 # mlp c_proj W/b
        ],
        out_specs=pl.BlockSpec((tm, H), lambda i: (i, 0)),
        compiler_params=pltpu.CompilerParams(
            dimension_semantics=("parallel",)),
    )(h2d, p["ln2_w"].reshape(1, -1), p["ln2_b"].reshape(1, -1),
      p["c_fc_w"], p["c_fc_b"].reshape(1, -1),
      p["mlp_proj_w"], p["mlp_proj_b"].reshape(1, -1))


def gpt2_block(x, p):
    """Forward of GPT2ModelPipe for one block. x: [B, S, H] float32."""
    B, S, H = x.shape
    h = attention_block(x, p)                   # LN1 + attn + proj + residual
    out = mlp_block(h.reshape(B * S, H), p)     # LN2 + MLP + residual
    return out.reshape(B, S, H)


# ----------------------- pure-JAX reference (for sanity check) -----------------------

def _ref_block(x, p):
    B, S, H = x.shape
    x2 = x.reshape(B * S, H)

    def ln(t, w, b):
        m = jnp.mean(t, -1, keepdims=True)
        v = jnp.mean((t - m) ** 2, -1, keepdims=True)
        return (t - m) / jnp.sqrt(v + LN_EPS) * w + b

    res = x2
    h = ln(x2, p["ln1_w"], p["ln1_b"])
    qkv = h @ p["c_attn_w"] + p["c_attn_b"]
    q, k, v = jnp.split(qkv, 3, -1)
    sh = lambda t: t.reshape(B, S, N_HEADS, HEAD_DIM).transpose(0, 2, 1, 3)
    q, k, v = sh(q), sh(k), sh(v)
    s = jnp.einsum("bhqd,bhkd->bhqk", q, k) / float(HEAD_DIM) ** 0.5
    mask = jnp.tril(jnp.ones((S, S), bool))
    s = jnp.where(mask[None, None], s, MASKED_BIAS)
    w = jax.nn.softmax(s, -1)
    a = jnp.einsum("bhqk,bhkd->bhqd", w, v).transpose(0, 2, 1, 3).reshape(B * S, H)
    attn_out = a @ p["c_proj_w"] + p["c_proj_b"]
    h = attn_out + res
    res = h
    h2 = ln(h, p["ln2_w"], p["ln2_b"])
    ff = 0.5 * (h2 @ p["c_fc_w"] + p["c_fc_b"])
    t = h2 @ p["c_fc_w"] + p["c_fc_b"]
    ff = 0.5 * t * (1.0 + jnp.tanh(jnp.sqrt(2.0 / jnp.pi) * (t + 0.044715 * t ** 3)))
    ff = ff @ p["mlp_proj_w"] + p["mlp_proj_b"]
    return (res + ff).reshape(B, S, H)


# ----------------------- params -----------------------

def init_params(key):
    ks = jax.random.split(key, 4)
    std = 0.02
    return {
        "ln1_w": jnp.ones((HIDDEN,), jnp.float32),
        "ln1_b": jnp.zeros((HIDDEN,), jnp.float32),
        "ln2_w": jnp.ones((HIDDEN,), jnp.float32),
        "ln2_b": jnp.zeros((HIDDEN,), jnp.float32),
        "c_attn_w": jax.random.normal(ks[0], (HIDDEN, 3 * HIDDEN), jnp.float32) * std,
        "c_attn_b": jnp.zeros((3 * HIDDEN,), jnp.float32),
        "c_proj_w": jax.random.normal(ks[1], (HIDDEN, HIDDEN), jnp.float32) * std,
        "c_proj_b": jnp.zeros((HIDDEN,), jnp.float32),
        "c_fc_w": jax.random.normal(ks[2], (HIDDEN, INNER), jnp.float32) * std,
        "c_fc_b": jnp.zeros((INNER,), jnp.float32),
        "mlp_proj_w": jax.random.normal(ks[3], (INNER, HIDDEN), jnp.float32) * std,
        "mlp_proj_b": jnp.zeros((HIDDEN,), jnp.float32),
    }


if __name__ == "__main__":
    key = jax.random.PRNGKey(0)
    k_x, k_p = jax.random.split(key)
    B, S = 2, 8
    x = jax.random.normal(k_x, (B, S, HIDDEN), jnp.float32)
    params = init_params(k_p)

    out = jax.jit(gpt2_block)(x, params)
    out = jax.block_until_ready(out)

    ref = _ref_block(x, params)
    assert out.shape == (B, S, HIDDEN)
    assert jnp.allclose(out, ref, atol=2e-4, rtol=2e-4), "mismatch vs pure-JAX reference"

    print("KERNEL_OK")
</pallas_src>

<mosaic_0001>
module attributes {stable_mosaic.version = 11 : i64} {
  func.func @mlp_block_kernel(%arg0: i32, %arg1: memref<8x32xf32, #tpu.memory_space<vmem>>, %arg2: memref<1x32xf32, #tpu.memory_space<vmem>>, %arg3: memref<1x32xf32, #tpu.memory_space<vmem>>, %arg4: memref<32x128xf32, #tpu.memory_space<vmem>>, %arg5: memref<1x128xf32, #tpu.memory_space<vmem>>, %arg6: memref<128x32xf32, #tpu.memory_space<vmem>>, %arg7: memref<1x32xf32, #tpu.memory_space<vmem>>, %arg8: memref<8x32xf32, #tpu.memory_space<vmem>>) attributes {dimension_semantics = [#tpu.dimension_semantics<parallel>], iteration_bounds = array<i64: 2>, scalar_prefetch = 0 : i64, scratch_operands = 0 : i64, tpu.core_type = #tpu.core_type<tc>, window_params = [{transform_indices = @transform_0, window_bounds = array<i64: 8, 32>}, {pipeline_mode = #tpu.pipeline_mode<synchronous>, transform_indices = @transform_1, window_bounds = array<i64: 1, 32>}, {pipeline_mode = #tpu.pipeline_mode<synchronous>, transform_indices = @transform_2, window_bounds = array<i64: 1, 32>}, {pipeline_mode = #tpu.pipeline_mode<synchronous>, transform_indices = @transform_3, window_bounds = array<i64: 32, 128>}, {pipeline_mode = #tpu.pipeline_mode<synchronous>, transform_indices = @transform_4, window_bounds = array<i64: 1, 128>}, {pipeline_mode = #tpu.pipeline_mode<synchronous>, transform_indices = @transform_5, window_bounds = array<i64: 128, 32>}, {pipeline_mode = #tpu.pipeline_mode<synchronous>, transform_indices = @transform_6, window_bounds = array<i64: 1, 32>}, {transform_indices = @transform_7, window_bounds = array<i64: 8, 32>}]} {
    %c0 = arith.constant 0 : index
    %c0_0 = arith.constant 0 : index
    %0 = vector.load %arg1[%c0, %c0_0] : memref<8x32xf32, #tpu.memory_space<vmem>>, vector<8x32xf32>
    %c0_1 = arith.constant 0 : index
    %c0_2 = arith.constant 0 : index
    %1 = vector.load %arg2[%c0_1, %c0_2] : memref<1x32xf32, #tpu.memory_space<vmem>>, vector<1x32xf32>
    %c0_3 = arith.constant 0 : index
    %c0_4 = arith.constant 0 : index
    %2 = vector.load %arg3[%c0_3, %c0_4] : memref<1x32xf32, #tpu.memory_space<vmem>>, vector<1x32xf32>
    %cst = arith.constant dense<0.000000e+00> : vector<8xf32>
    %3 = vector.multi_reduction <add>, %0, %cst [1] : vector<8x32xf32> to vector<8xf32>
    %4 = vector.shape_cast %3 : vector<8xf32> to vector<8x1xf32>
    %cst_5 = arith.constant 3.200000e+01 : f32
    %5 = vector.broadcast %cst_5 : f32 to vector<8x1xf32>
    %6 = arith.divf %4, %5 : vector<8x1xf32>
    %7 = vector.broadcast %6 : vector<8x1xf32> to vector<8x32xf32>
    %8 = arith.subf %0, %7 : vector<8x32xf32>
    %9 = arith.mulf %8, %8 : vector<8x32xf32>
    %cst_6 = arith.constant dense<0.000000e+00> : vector<8xf32>
    %10 = vector.multi_reduction <add>, %9, %cst_6 [1] : vector<8x32xf32> to vector<8xf32>
    %11 = vector.shape_cast %10 : vector<8xf32> to vector<8x1xf32>
    %cst_7 = arith.constant 3.200000e+01 : f32
    %12 = vector.broadcast %cst_7 : f32 to vector<8x1xf32>
    %13 = arith.divf %11, %12 : vector<8x1xf32>
    %14 = vector.broadcast %6 : vector<8x1xf32> to vector<8x32xf32>
    %15 = arith.subf %0, %14 : vector<8x32xf32>
    %cst_8 = arith.constant 9.99999974E-6 : f32
    %16 = vector.broadcast %cst_8 : f32 to vector<8x1xf32>
    %17 = arith.addf %13, %16 : vector<8x1xf32>
    %18 = math.rsqrt %17 : vector<8x1xf32>
    %19 = vector.broadcast %18 : vector<8x1xf32> to vector<8x32xf32>
    %20 = arith.mulf %15, %19 : vector<8x32xf32>
    %21 = vector.broadcast %1 : vector<1x32xf32> to vector<8x32xf32>
    %22 = arith.mulf %20, %21 : vector<8x32xf32>
    %23 = vector.broadcast %2 : vector<1x32xf32> to vector<8x32xf32>
    %24 = arith.addf %22, %23 : vector<8x32xf32>
    %c0_9 = arith.constant 0 : index
    %c0_10 = arith.constant 0 : index
    %25 = vector.load %arg4[%c0_9, %c0_10] : memref<32x128xf32, #tpu.memory_space<vmem>>, vector<32x128xf32>
    %cst_11 = arith.constant dense<0.000000e+00> : vector<8x128xf32>
    %26 = tpu.matmul %24, %25, %cst_11 {dimension_numbers = #tpu.dot_dimension_numbers<[1], [0], [0], [1], [0, 0, 1, 1], [], []>} : vector<8x32xf32>, vector<32x128xf32>, vector<8x128xf32> -> vector<8x128xf32>
    %c0_12 = arith.constant 0 : index
    %c0_13 = arith.constant 0 : index
    %27 = vector.load %arg5[%c0_12, %c0_13] : memref<1x128xf32, #tpu.memory_space<vmem>>, vector<1x128xf32>
    %28 = vector.broadcast %27 : vector<1x128xf32> to vector<8x128xf32>
    %29 = arith.addf %26, %28 : vector<8x128xf32>
    %cst_14 = arith.constant 5.000000e-01 : f32
    %30 = vector.broadcast %cst_14 : f32 to vector<8x128xf32>
    %31 = arith.mulf %30, %29 : vector<8x128xf32>
    %cst_15 = arith.constant 0.636619746 : f32
    %32 = math.sqrt %cst_15 : f32
    %33 = arith.mulf %29, %29 : vector<8x128xf32>
    %34 = arith.mulf %33, %29 : vector<8x128xf32>
    %cst_16 = arith.constant 4.471500e-02 : f32
    %35 = vector.broadcast %cst_16 : f32 to vector<8x128xf32>
    %36 = arith.mulf %35, %34 : vector<8x128xf32>
    %37 = arith.addf %29, %36 : vector<8x128xf32>
    %38 = vector.broadcast %32 : f32 to vector<8x128xf32>
    %39 = arith.mulf %38, %37 : vector<8x128xf32>
    %40 = math.tanh %39 : vector<8x128xf32>
    %cst_17 = arith.constant 1.000000e+00 : f32
    %41 = vector.broadcast %cst_17 : f32 to vector<8x128xf32>
    %42 = arith.addf %41, %40 : vector<8x128xf32>
    %43 = arith.mulf %31, %42 : vector<8x128xf32>
    %c0_18 = arith.constant 0 : index
    %c0_19 = arith.constant 0 : index
    %44 = vector.load %arg6[%c0_18, %c0_19] : memref<128x32xf32, #tpu.memory_space<vmem>>, vector<128x32xf32>
    %cst_20 = arith.constant dense<0.000000e+00> : vector<8x32xf32>
    %45 = tpu.matmul %43, %44, %cst_20 {dimension_numbers = #tpu.dot_dimension_numbers<[1], [0], [0], [1], [0, 0, 1, 1], [], []>} : vector<8x128xf32>, vector<128x32xf32>, vector<8x32xf32> -> vector<8x32xf32>
    %c0_21 = arith.constant 0 : index
    %c0_22 = arith.constant 0 : index
    %46 = vector.load %arg7[%c0_21, %c0_22] : memref<1x32xf32, #tpu.memory_space<vmem>>, vector<1x32xf32>
    %47 = vector.broadcast %46 : vector<1x32xf32> to vector<8x32xf32>
    %48 = arith.addf %45, %47 : vector<8x32xf32>
    %49 = arith.addf %0, %48 : vector<8x32xf32>
    %c0_23 = arith.constant 0 : index
    %c0_24 = arith.constant 0 : index
    %50 = vector.load %arg8[%c0_23, %c0_24] : memref<8x32xf32, #tpu.memory_space<vmem>>, vector<8x32xf32>
    tpu.vector_store %arg8[%c0_23, %c0_24], %49 {strides = array<i32>} : memref<8x32xf32, #tpu.memory_space<vmem>>, vector<8x32xf32>,
    return
  }
  func.func @transform_0(%arg0: i32) -> (i32, i32) {
    %c0_i32 = arith.constant 0 : i32
    %c0_i32_0 = arith.constant 0 : i32
    return %arg0, %c0_i32 : i32, i32
  }
  func.func @transform_1(%arg0: i32) -> (i32, i32) {
    %c0_i32 = arith.constant 0 : i32
    %c0_i32_0 = arith.constant 0 : i32
    %c0_i32_1 = arith.constant 0 : i32
    return %c0_i32, %c0_i32_0 : i32, i32
  }
  func.func @transform_2(%arg0: i32) -> (i32, i32) {
    %c0_i32 = arith.constant 0 : i32
    %c0_i32_0 = arith.constant 0 : i32
    %c0_i32_1 = arith.constant 0 : i32
    return %c0_i32, %c0_i32_0 : i32, i32
  }
  func.func @transform_3(%arg0: i32) -> (i32, i32) {
    %c0_i32 = arith.constant 0 : i32
    %c0_i32_0 = arith.constant 0 : i32
    %c0_i32_1 = arith.constant 0 : i32
    return %c0_i32, %c0_i32_0 : i32, i32
  }
  func.func @transform_4(%arg0: i32) -> (i32, i32) {
    %c0_i32 = arith.constant 0 : i32
    %c0_i32_0 = arith.constant 0 : i32
    %c0_i32_1 = arith.constant 0 : i32
    return %c0_i32, %c0_i32_0 : i32, i32
  }
  func.func @transform_5(%arg0: i32) -> (i32, i32) {
    %c0_i32 = arith.constant 0 : i32
    %c0_i32_0 = arith.constant 0 : i32
    %c0_i32_1 = arith.constant 0 : i32
    return %c0_i32, %c0_i32_0 : i32, i32
  }
  func.func @transform_6(%arg0: i32) -> (i32, i32) {
    %c0_i32 = arith.constant 0 : i32
    %c0_i32_0 = arith.constant 0 : i32
    %c0_i32_1 = arith.constant 0 : i32
    return %c0_i32, %c0_i32_0 : i32, i32
  }
  func.func @transform_7(%arg0: i32) -> (i32, i32) {
    %c0_i32 = arith.constant 0 : i32
    %c0_i32_0 = arith.constant 0 : i32
    return %arg0, %c0_i32 : i32, i32
  }
}

module attributes {stable_mosaic.version = 11 : i64} {
  func.func @attn_block_kernel(%arg0: i32, %arg1: memref<1x8x32xf32, #tpu.memory_space<vmem>>, %arg2: memref<1x32xf32, #tpu.memory_space<vmem>>, %arg3: memref<1x32xf32, #tpu.memory_space<vmem>>, %arg4: memref<32x96xf32, #tpu.memory_space<vmem>>, %arg5: memref<1x96xf32, #tpu.memory_space<vmem>>, %arg6: memref<32x32xf32, #tpu.memory_space<vmem>>, %arg7: memref<1x32xf32, #tpu.memory_space<vmem>>, %arg8: memref<1x8x32xf32, #tpu.memory_space<vmem>>) attributes {dimension_semantics = [#tpu.dimension_semantics<parallel>], iteration_bounds = array<i64: 2>, scalar_prefetch = 0 : i64, scratch_operands = 0 : i64, tpu.core_type = #tpu.core_type<tc>, window_params = [{transform_indices = @transform_0, window_bounds = array<i64: 1, 8, 32>}, {pipeline_mode = #tpu.pipeline_mode<synchronous>, transform_indices = @transform_1, window_bounds = array<i64: 1, 32>}, {pipeline_mode = #tpu.pipeline_mode<synchronous>, transform_indices = @transform_2, window_bounds = array<i64: 1, 32>}, {pipeline_mode = #tpu.pipeline_mode<synchronous>, transform_indices = @transform_3, window_bounds = array<i64: 32, 96>}, {pipeline_mode = #tpu.pipeline_mode<synchronous>, transform_indices = @transform_4, window_bounds = array<i64: 1, 96>}, {pipeline_mode = #tpu.pipeline_mode<synchronous>, transform_indices = @transform_5, window_bounds = array<i64: 32, 32>}, {pipeline_mode = #tpu.pipeline_mode<synchronous>, transform_indices = @transform_6, window_bounds = array<i64: 1, 32>}, {transform_indices = @transform_7, window_bounds = array<i64: 1, 8, 32>}]} {
    %c0 = arith.constant 0 : index
    %c0_0 = arith.constant 0 : index
    %c0_1 = arith.constant 0 : index
    %0 = vector.load %arg1[%c0, %c0_0, %c0_1] : memref<1x8x32xf32, #tpu.memory_space<vmem>>, vector<1x8x32xf32>
    %1 = vector.shape_cast %0 : vector<1x8x32xf32> to vector<8x32xf32>
    %c0_2 = arith.constant 0 : index
    %c0_3 = arith.constant 0 : index
    %2 = vector.load %arg2[%c0_2, %c0_3] : memref<1x32xf32, #tpu.memory_space<vmem>>, vector<1x32xf32>
    %c0_4 = arith.constant 0 : index
    %c0_5 = arith.constant 0 : index
    %3 = vector.load %arg3[%c0_4, %c0_5] : memref<1x32xf32, #tpu.memory_space<vmem>>, vector<1x32xf32>
    %cst = arith.constant dense<0.000000e+00> : vector<8xf32>
    %4 = vector.multi_reduction <add>, %1, %cst [1] : vector<8x32xf32> to vector<8xf32>
    %5 = vector.shape_cast %4 : vector<8xf32> to vector<8x1xf32>
    %cst_6 = arith.constant 3.200000e+01 : f32
    %6 = vector.broadcast %cst_6 : f32 to vector<8x1xf32>
    %7 = arith.divf %5, %6 : vector<8x1xf32>
    %8 = vector.broadcast %7 : vector<8x1xf32> to vector<8x32xf32>
    %9 = arith.subf %1, %8 : vector<8x32xf32>
    %10 = arith.mulf %9, %9 : vector<8x32xf32>
    %cst_7 = arith.constant dense<0.000000e+00> : vector<8xf32>
    %11 = vector.multi_reduction <add>, %10, %cst_7 [1] : vector<8x32xf32> to vector<8xf32>
    %12 = vector.shape_cast %11 : vector<8xf32> to vector<8x1xf32>
    %cst_8 = arith.constant 3.200000e+01 : f32
    %13 = vector.broadcast %cst_8 : f32 to vector<8x1xf32>
    %14 = arith.divf %12, %13 : vector<8x1xf32>
    %15 = vector.broadcast %7 : vector<8x1xf32> to vector<8x32xf32>
    %16 = arith.subf %1, %15 : vector<8x32xf32>
    %cst_9 = arith.constant 9.99999974E-6 : f32
    %17 = vector.broadcast %cst_9 : f32 to vector<8x1xf32>
    %18 = arith.addf %14, %17 : vector<8x1xf32>
    %19 = math.rsqrt %18 : vector<8x1xf32>
    %20 = vector.broadcast %19 : vector<8x1xf32> to vector<8x32xf32>
    %21 = arith.mulf %16, %20 : vector<8x32xf32>
    %22 = vector.broadcast %2 : vector<1x32xf32> to vector<8x32xf32>
    %23 = arith.mulf %21, %22 : vector<8x32xf32>
    %24 = vector.broadcast %3 : vector<1x32xf32> to vector<8x32xf32>
    %25 = arith.addf %23, %24 : vector<8x32xf32>
    %c0_10 = arith.constant 0 : index
    %c0_11 = arith.constant 0 : index
    %26 = vector.load %arg4[%c0_10, %c0_11] : memref<32x96xf32, #tpu.memory_space<vmem>>, vector<32x96xf32>
    %cst_12 = arith.constant dense<0.000000e+00> : vector<8x96xf32>
    %27 = tpu.matmul %25, %26, %cst_12 {dimension_numbers = #tpu.dot_dimension_numbers<[1], [0], [0], [1], [0, 0, 1, 1], [], []>} : vector<8x32xf32>, vector<32x96xf32>, vector<8x96xf32> -> vector<8x96xf32>
    %c0_13 = arith.constant 0 : index
    %c0_14 = arith.constant 0 : index
    %28 = vector.load %arg5[%c0_13, %c0_14] : memref<1x96xf32, #tpu.memory_space<vmem>>, vector<1x96xf32>
    %29 = vector.broadcast %28 : vector<1x96xf32> to vector<8x96xf32>
    %30 = arith.addf %27, %29 : vector<8x96xf32>
    %31 = tpu.iota {dimensions = array<i32: 0>} : vector<8x8xi32>
    %32 = tpu.iota {dimensions = array<i32: 1>} : vector<8x8xi32>
    %33 = arith.cmpi sle, %32, %31 : vector<8x8xi32>
    %c0_15 = arith.constant 0 : index
    %c0_16 = arith.constant 0 : index
    %34 = vector.load %arg6[%c0_15, %c0_16] : memref<32x32xf32, #tpu.memory_space<vmem>>, vector<32x32xf32>
    %cst_17 = arith.constant 0.000000e+00 : f32
    %35 = vector.broadcast %cst_17 : f32 to vector<8x32xf32>
    %36 = vector.extract_strided_slice %30 {offsets = [0, 0], sizes = [8, 8], strides = [1, 1]} : vector<8x96xf32> to vector<8x8xf32>
    %cst_18 = arith.constant 0.353553385 : f32
    %37 = vector.broadcast %cst_18 : f32 to vector<8x8xf32>
    %38 = arith.mulf %36, %37 : vector<8x8xf32>
    %39 = vector.extract_strided_slice %30 {offsets = [0, 32], sizes = [8, 8], strides = [1, 1]} : vector<8x96xf32> to vector<8x8xf32>
    %40 = vector.extract_strided_slice %30 {offsets = [0, 64], sizes = [8, 8], strides = [1, 1]} : vector<8x96xf32> to vector<8x8xf32>
    %cst_19 = arith.constant dense<0.000000e+00> : vector<8x8xf32>
    %41 = tpu.matmul %38, %39, %cst_19 {dimension_numbers = #tpu.dot_dimension_numbers<[1], [1], [0], [0], [0, 0, 1, 0], [], []>} : vector<8x8xf32>, vector<8x8xf32>, vector<8x8xf32> -> vector<8x8xf32>
    %cst_20 = arith.constant -1.000000e+04 : f32
    %42 = vector.broadcast %cst_20 : f32 to vector<8x8xf32>
    %43 = arith.select %33, %41, %42 : vector<8x8xi1>, vector<8x8xf32>
    %cst_21 = arith.constant dense<0xFF800000> : vector<8xf32>
    %44 = vector.multi_reduction <maximumf>, %43, %cst_21 [1] : vector<8x8xf32> to vector<8xf32>
    %45 = vector.shape_cast %44 : vector<8xf32> to vector<8x1xf32>
    %46 = vector.broadcast %45 : vector<8x1xf32> to vector<8x8xf32>
    %47 = arith.subf %43, %46 : vector<8x8xf32>
    %48 = math.exp %47 : vector<8x8xf32>
    %cst_22 = arith.constant dense<0.000000e+00> : vector<8xf32>
    %49 = vector.multi_reduction <add>, %48, %cst_22 [1] : vector<8x8xf32> to vector<8xf32>
    %50 = vector.shape_cast %49 : vector<8xf32> to vector<8x1xf32>
    %51 = vector.broadcast %50 : vector<8x1xf32> to vector<8x8xf32>
    %52 = arith.divf %48, %51 : vector<8x8xf32>
    %cst_23 = arith.constant dense<0.000000e+00> : vector<8x8xf32>
    %53 = tpu.matmul %52, %40, %cst_23 {dimension_numbers = #tpu.dot_dimension_numbers<[1], [0], [0], [1], [0, 0, 1, 1], [], []>} : vector<8x8xf32>, vector<8x8xf32>, vector<8x8xf32> -> vector<8x8xf32>
    %54 = vector.extract_strided_slice %34 {offsets = [0, 0], sizes = [8, 32], strides = [1, 1]} : vector<32x32xf32> to vector<8x32xf32>
    %cst_24 = arith.constant dense<0.000000e+00> : vector<8x32xf32>
    %55 = tpu.matmul %53, %54, %cst_24 {dimension_numbers = #tpu.dot_dimension_numbers<[1], [0], [0], [1], [0, 0, 1, 1], [], []>} : vector<8x8xf32>, vector<8x32xf32>, vector<8x32xf32> -> vector<8x32xf32>
    %56 = arith.addf %35, %55 : vector<8x32xf32>
    %57 = vector.extract_strided_slice %30 {offsets = [0, 8], sizes = [8, 8], strides = [1, 1]} : vector<8x96xf32> to vector<8x8xf32>
    %cst_25 = arith.constant 0.353553385 : f32
    %58 = vector.broadcast %cst_25 : f32 to vector<8x8xf32>
    %59 = arith.mulf %57, %58 : vector<8x8xf32>
    %60 = vector.extract_strided_slice %30 {offsets = [0, 40], sizes = [8, 8], strides = [1, 1]} : vector<8x96xf32> to vector<8x8xf32>
    %61 = vector.extract_strided_slice %30 {offsets = [0, 72], sizes = [8, 8], strides = [1, 1]} : vector<8x96xf32> to vector<8x8xf32>
    %cst_26 = arith.constant dense<0.000000e+00> : vector<8x8xf32>
    %62 = tpu.matmul %59, %60, %cst_26 {dimension_numbers = #tpu.dot_dimension_numbers<[1], [1], [0], [0], [0, 0, 1, 0], [], []>} : vector<8x8xf32>, vector<8x8xf32>, vector<8x8xf32> -> vector<8x8xf32>
    %cst_27 = arith.constant -1.000000e+04 : f32
    %63 = vector.broadcast %cst_27 : f32 to vector<8x8xf32>
    %64 = arith.select %33, %62, %63 : vector<8x8xi1>, vector<8x8xf32>
    %cst_28 = arith.constant dense<0xFF800000> : vector<8xf32>
    %65 = vector.multi_reduction <maximumf>, %64, %cst_28 [1] : vector<8x8xf32> to vector<8xf32>
    %66 = vector.shape_cast %65 : vector<8xf32> to vector<8x1xf32>
    %67 = vector.broadcast %66 : vector<8x1xf32> to vector<8x8xf32>
    %68 = arith.subf %64, %67 : vector<8x8xf32>
    %69 = math.exp %68 : vector<8x8xf32>
    %cst_29 = arith.constant dense<0.000000e+00> : vector<8xf32>
    %70 = vector.multi_reduction <add>, %69, %cst_29 [1] : vector<8x8xf32> to vector<8xf32>
    %71 = vector.shape_cast %70 : vector<8xf32> to vector<8x1xf32>
    %72 = vector.broadcast %71 : vector<8x1xf32> to vector<8x8xf32>
    %73 = arith.divf %69, %72 : vector<8x8xf32>
    %cst_30 = arith.constant dense<0.000000e+00> : vector<8x8xf32>
    %74 = tpu.matmul %73, %61, %cst_30 {dimension_numbers = #tpu.dot_dimension_numbers<[1], [0], [0], [1], [0, 0, 1, 1], [], []>} : vector<8x8xf32>, vector<8x8xf32>, vector<8x8xf32> -> vector<8x8xf32>
    %75 = vector.extract_strided_slice %34 {offsets = [8, 0], sizes = [8, 32], strides = [1, 1]} : vector<32x32xf32> to vector<8x32xf32>
    %cst_31 = arith.constant dense<0.000000e+00> : vector<8x32xf32>
    %76 = tpu.matmul %74, %75, %cst_31 {dimension_numbers = #tpu.dot_dimension_numbers<[1], [0], [0], [1], [0, 0, 1, 1], [], []>} : vector<8x8xf32>, vector<8x32xf32>, vector<8x32xf32> -> vector<8x32xf32>
    %77 = arith.addf %56, %76 : vector<8x32xf32>
    %78 = vector.extract_strided_slice %30 {offsets = [0, 16], sizes = [8, 8], strides = [1, 1]} : vector<8x96xf32> to vector<8x8xf32>
    %cst_32 = arith.constant 0.353553385 : f32
    %79 = vector.broadcast %cst_32 : f32 to vector<8x8xf32>
    %80 = arith.mulf %78, %79 : vector<8x8xf32>
    %81 = vector.extract_strided_slice %30 {offsets = [0, 48], sizes = [8, 8], strides = [1, 1]} : vector<8x96xf32> to vector<8x8xf32>
    %82 = vector.extract_strided_slice %30 {offsets = [0, 80], sizes = [8, 8], strides = [1, 1]} : vector<8x96xf32> to vector<8x8xf32>
    %cst_33 = arith.constant dense<0.000000e+00> : vector<8x8xf32>
    %83 = tpu.matmul %80, %81, %cst_33 {dimension_numbers = #tpu.dot_dimension_numbers<[1], [1], [0], [0], [0, 0, 1, 0], [], []>} : vector<8x8xf32>, vector<8x8xf32>, vector<8x8xf32> -> vector<8x8xf32>
    %cst_34 = arith.constant -1.000000e+04 : f32
    %84 = vector.broadcast %cst_34 : f32 to vector<8x8xf32>
    %85 = arith.select %33, %83, %84 : vector<8x8xi1>, vector<8x8xf32>
    %cst_35 = arith.constant dense<0xFF800000> : vector<8xf32>
    %86 = vector.multi_reduction <maximumf>, %85, %cst_35 [1] : vector<8x8xf32> to vector<8xf32>
    %87 = vector.shape_cast %86 : vector<8xf32> to vector<8x1xf32>
    %88 = vector.broadcast %87 : vector<8x1xf32> to vector<8x8xf32>
    %89 = arith.subf %85, %88 : vector<8x8xf32>
    %90 = math.exp %89 : vector<8x8xf32>
    %cst_36 = arith.constant dense<0.000000e+00> : vector<8xf32>
    %91 = vector.multi_reduction <add>, %90, %cst_36 [1] : vector<8x8xf32> to vector<8xf32>
    %92 = vector.shape_cast %91 : vector<8xf32> to vector<8x1xf32>
    %93 = vector.broadcast %92 : vector<8x1xf32> to vector<8x8xf32>
    %94 = arith.divf %90, %93 : vector<8x8xf32>
    %cst_37 = arith.constant dense<0.000000e+00> : vector<8x8xf32>
    %95 = tpu.matmul %94, %82, %cst_37 {dimension_numbers = #tpu.dot_dimension_numbers<[1], [0], [0], [1], [0, 0, 1, 1], [], []>} : vector<8x8xf32>, vector<8x8xf32>, vector<8x8xf32> -> vector<8x8xf32>
    %96 = vector.extract_strided_slice %34 {offsets = [16, 0], sizes = [8, 32], strides = [1, 1]} : vector<32x32xf32> to vector<8x32xf32>
    %cst_38 = arith.constant dense<0.000000e+00> : vector<8x32xf32>
    %97 = tpu.matmul %95, %96, %cst_38 {dimension_numbers = #tpu.dot_dimension_numbers<[1], [0], [0], [1], [0, 0, 1, 1], [], []>} : vector<8x8xf32>, vector<8x32xf32>, vector<8x32xf32> -> vector<8x32xf32>
    %98 = arith.addf %77, %97 : vector<8x32xf32>
    %99 = vector.extract_strided_slice %30 {offsets = [0, 24], sizes = [8, 8], strides = [1, 1]} : vector<8x96xf32> to vector<8x8xf32>
    %cst_39 = arith.constant 0.353553385 : f32
    %100 = vector.broadcast %cst_39 : f32 to vector<8x8xf32>
    %101 = arith.mulf %99, %100 : vector<8x8xf32>
    %102 = vector.extract_strided_slice %30 {offsets = [0, 56], sizes = [8, 8], strides = [1, 1]} : vector<8x96xf32> to vector<8x8xf32>
    %103 = vector.extract_strided_slice %30 {offsets = [0, 88], sizes = [8, 8], strides = [1, 1]} : vector<8x96xf32> to vector<8x8xf32>
    %cst_40 = arith.constant dense<0.000000e+00> : vector<8x8xf32>
    %104 = tpu.matmul %101, %102, %cst_40 {dimension_numbers = #tpu.dot_dimension_numbers<[1], [1], [0], [0], [0, 0, 1, 0], [], []>} : vector<8x8xf32>, vector<8x8xf32>, vector<8x8xf32> -> vector<8x8xf32>
    %cst_41 = arith.constant -1.000000e+04 : f32
    %105 = vector.broadcast %cst_41 : f32 to vector<8x8xf32>
    %106 = arith.select %33, %104, %105 : vector<8x8xi1>, vector<8x8xf32>
    %cst_42 = arith.constant dense<0xFF800000> : vector<8xf32>
    %107 = vector.multi_reduction <maximumf>, %106, %cst_42 [1] : vector<8x8xf32> to vector<8xf32>
    %108 = vector.shape_cast %107 : vector<8xf32> to vector<8x1xf32>
    %109 = vector.broadcast %108 : vector<8x1xf32> to vector<8x8xf32>
    %110 = arith.subf %106, %109 : vector<8x8xf32>
    %111 = math.exp %110 : vector<8x8xf32>
    %cst_43 = arith.constant dense<0.000000e+00> : vector<8xf32>
    %112 = vector.multi_reduction <add>, %111, %cst_43 [1] : vector<8x8xf32> to vector<8xf32>
    %113 = vector.shape_cast %112 : vector<8xf32> to vector<8x1xf32>
    %114 = vector.broadcast %113 : vector<8x1xf32> to vector<8x8xf32>
    %115 = arith.divf %111, %114 : vector<8x8xf32>
    %cst_44 = arith.constant dense<0.000000e+00> : vector<8x8xf32>
    %116 = tpu.matmul %115, %103, %cst_44 {dimension_numbers = #tpu.dot_dimension_numbers<[1], [0], [0], [1], [0, 0, 1, 1], [], []>} : vector<8x8xf32>, vector<8x8xf32>, vector<8x8xf32> -> vector<8x8xf32>
    %117 = vector.extract_strided_slice %34 {offsets = [24, 0], sizes = [8, 32], strides = [1, 1]} : vector<32x32xf32> to vector<8x32xf32>
    %cst_45 = arith.constant dense<0.000000e+00> : vector<8x32xf32>
    %118 = tpu.matmul %116, %117, %cst_45 {dimension_numbers = #tpu.dot_dimension_numbers<[1], [0], [0], [1], [0, 0, 1, 1], [], []>} : vector<8x8xf32>, vector<8x32xf32>, vector<8x32xf32> -> vector<8x32xf32>
    %119 = arith.addf %98, %118 : vector<8x32xf32>
    %c0_46 = arith.constant 0 : index
    %c0_47 = arith.constant 0 : index
    %120 = vector.load %arg7[%c0_46, %c0_47] : memref<1x32xf32, #tpu.memory_space<vmem>>, vector<1x32xf32>
    %121 = vector.broadcast %120 : vector<1x32xf32> to vector<8x32xf32>
    %122 = arith.addf %119, %121 : vector<8x32xf32>
    %123 = arith.addf %1, %122 : vector<8x32xf32>
    %c0_48 = arith.constant 0 : index
    %c0_49 = arith.constant 0 : index
    %c0_50 = arith.constant 0 : index
    %124 = vector.load %arg8[%c0_48, %c0_49, %c0_50] : memref<1x8x32xf32, #tpu.memory_space<vmem>>, vector<1x8x32xf32>
    %125 = vector.shape_cast %124 : vector<1x8x32xf32> to vector<8x32xf32>
    %126 = vector.shape_cast %123 : vector<8x32xf32> to vector<1x8x32xf32>
    tpu.vector_store %arg8[%c0_48, %c0_49, %c0_50], %126 {strides = array<i32>} : memref<1x8x32xf32, #tpu.memory_space<vmem>>, vector<1x8x32xf32>,
    return
  }
  func.func @transform_0(%arg0: i32) -> (i32, i32, i32) {
    %c0_i32 = arith.constant 0 : i32
    %c0_i32_0 = arith.constant 0 : i32
    %c0_i32_1 = arith.constant 0 : i32
    return %arg0, %c0_i32, %c0_i32_0 : i32, i32, i32
  }
  func.func @transform_1(%arg0: i32) -> (i32, i32) {
    %c0_i32 = arith.constant 0 : i32
    %c0_i32_0 = arith.constant 0 : i32
    %c0_i32_1 = arith.constant 0 : i32
    return %c0_i32, %c0_i32_0 : i32, i32
  }
  func.func @transform_2(%arg0: i32) -> (i32, i32) {
    %c0_i32 = arith.constant 0 : i32
    %c0_i32_0 = arith.constant 0 : i32
    %c0_i32_1 = arith.constant 0 : i32
    return %c0_i32, %c0_i32_0 : i32, i32
  }
  func.func @transform_3(%arg0: i32) -> (i32, i32) {
    %c0_i32 = arith.constant 0 : i32
    %c0_i32_0 = arith.constant 0 : i32
    %c0_i32_1 = arith.constant 0 : i32
    return %c0_i32, %c0_i32_0 : i32, i32
  }
  func.func @transform_4(%arg0: i32) -> (i32, i32) {
    %c0_i32 = arith.constant 0 : i32
    %c0_i32_0 = arith.constant 0 : i32
    %c0_i32_1 = arith.constant 0 : i32
    return %c0_i32, %c0_i32_0 : i32, i32
  }
  func.func @transform_5(%arg0: i32) -> (i32, i32) {
    %c0_i32 = arith.constant 0 : i32
    %c0_i32_0 = arith.constant 0 : i32
    %c0_i32_1 = arith.constant 0 : i32
    return %c0_i32, %c0_i32_0 : i32, i32
  }
  func.func @transform_6(%arg0: i32) -> (i32, i32) {
    %c0_i32 = arith.constant 0 : i32
    %c0_i32_0 = arith.constant 0 : i32
    %c0_i32_1 = arith.constant 0 : i32
    return %c0_i32, %c0_i32_0 : i32, i32
  }
  func.func @transform_7(%arg0: i32) -> (i32, i32, i32) {
    %c0_i32 = arith.constant 0 : i32
    %c0_i32_0 = arith.constant 0 : i32
    %c0_i32_1 = arith.constant 0 : i32
    return %arg0, %c0_i32, %c0_i32_0 : i32, i32, i32
  }
}

</mosaic_0001>

<llo_original>
// kernel: gpt2_block.3
$region0: #{gpt2_block.3}
  #allocation0 [shape = 'u32[]', space=smem, size = 0x4, offset = 0x4, fixed_abs, tag = 'smem constant byte address 0x4 - core index']
  #allocation1 [shape = 'u32[144,128]{1,0:T(1,128)}', space=vmem, size = 0x12000, scoped, tag = 'internal scratch']
  %s0 = inlined_call_operand.vmem [shape: f32[16,32], index: 0, kind: input, shape index: {}]
  %s1 = inlined_call_operand.vmem [shape: f32[1,32], index: 1, kind: input, shape index: {}]
  %s2 = inlined_call_operand.vmem [shape: f32[1,32], index: 2, kind: input, shape index: {}]
  %s3 = inlined_call_operand.vmem [shape: f32[32,128], index: 3, kind: input, shape index: {}]
  %s4 = inlined_call_operand.vmem [shape: f32[1,128], index: 4, kind: input, shape index: {}]
  %s5 = inlined_call_operand.vmem [shape: f32[128,32], index: 5, kind: input, shape index: {}]
  %s6 = inlined_call_operand.vmem [shape: f32[1,32], index: 6, kind: input, shape index: {}]
  %s7 = inlined_call_operand.hbm [shape: f32[16,32], index: 7, kind: output, shape index: {}]
  %s8 = sld [smem:[#allocation0]]
  $region61: #{gpt2_block.3} parent=0
    _
  %s10 = ssub.s32 1, %s8
  %s11 = scalar_select 0, %s10, %s8
  $region1: #{gpt2_block.3} parent=0
    #allocation2 [shape = 'u8[8192]{0}', space=vmem, size = 0x2000, scoped, tag = 'output window, operand 0']
    #allocation3 [shape = 's32[2]{0}', space=sflag, size = 0x8, scoped, tag = 'scoped memory for gpt2_block.3']
    %12 = vsyncpa [#allocation3], 0
    %s13 = scalar_lea.sflag [#allocation3], 1
    %14 = vsyncpa %s13, 0
    loop: start=0, step=1, limit=4
    $region2: #{gpt2_block.3} parent=1 // loop_pre_header
      _
    $region3: #{gpt2_block.3} parent=1 // loop_header
      %s16 = sphi 0, %s20
      %p17 = scmp.ge.s32.totalorder %s16, 4
      %s26 = sphi 0, %s28
      %s29 = sphi 0, %s26
      %s30 = sphi 0, %s29
      %s46 = sphi 0, %s30
      %s50 = sphi 0, %s50
      %s52 = sphi 0, %s50
      %s53 = sphi 0, %s52
      %s67 = sphi 0, %s53
      %s71 = sphi 0, %s71
      %s73 = sphi 0, %s71
      %s74 = sphi 0, %s73
      %s88 = sphi 0, %s74
      %s92 = sphi 0, %s92
      %s94 = sphi 0, %s92
      %s95 = sphi 0, %s94
      %s109 = sphi 0, %s95
      %s113 = sphi 0, %s113
      %s115 = sphi 0, %s113
      %s116 = sphi 0, %s115
      %s130 = sphi 0, %s116
      %s134 = sphi 0, %s134
      %s136 = sphi 0, %s134
      %s137 = sphi 0, %s136
      %s151 = sphi 0, %s137
      %s155 = sphi 0, %s155
      %s157 = sphi 0, %s155
      %s158 = sphi 0, %s157
      %s172 = sphi 0, %s158
      %s178 = sphi 0, %s180
      %s181 = sphi 0, %s178
      %s182 = sphi 0, %s181
      %s198 = sphi 0, %s182
    $region4: #{gpt2_block.3} parent=1 // loop_header_branch
      %19 = sbr.rel (%p17) target = $region8
    $region5: #{gpt2_block.3} parent=1 // loop_body
      %s21 = ssub.s32 %s16, 1
      %s22 = ssub.s32 %s16, 2
      %s23 = sadd.s32 %s16, 1
      %s24 = ssub.s32 %s16, %s23
      %p25 = scmp.eq.s32.totalorder %s24, 0
      %s27 = sadd.s32 %s26, 1
      %s28 = scalar_select %p25, %s26, %s27
      %p31 = pneg %p25
      %p32 = scmp.eq.s32.totalorder %s16, 1
      %p33 = por %p31, %p32
      %p34 = scmp.ne.s32.totalorder %s26, %s29
      %p35 = scmp.eq.s32.totalorder %s16, 0
      %p36 = por %p34, %p35
      %p37 = scmp.ne.s32.totalorder %s26, %s29
      %p38 = scmp.eq.s32.totalorder %s21, 1
      %p39 = por %p37, %p38
      %p40 = scmp.ne.s32.totalorder %s29, %s30
      %p41 = scmp.eq.s32.totalorder %s21, 0
      %p42 = por %p40, %p41
      %p43 = scmp.ne.s32.totalorder %s29, %s30
      %p44 = scmp.eq.s32.totalorder %s22, 1
      %p45 = por %p43, %p44
      %p47 = scmp.ne.s32.totalorder %s30, %s46
      %p48 = scmp.eq.s32.totalorder %s22, 0
      %p49 = por %p47, %p48
      %s51 = sadd.s32 %s50, 1
      %p54 = scmp.eq.s32.totalorder %s16, 1
      %p55 = scmp.ne.s32.totalorder %s50, %s52
      %p56 = scmp.eq.s32.totalorder %s16, 0
      %p57 = por %p55, %p56
      %p58 = scmp.ne.s32.totalorder %s50, %s52
      %p59 = scmp.eq.s32.totalorder %s21, 1
      %p60 = por %p58, %p59
      %p61 = scmp.ne.s32.totalorder %s52, %s53
      %p62 = scmp.eq.s32.totalorder %s21, 0
      %p63 = por %p61, %p62
      %p64 = scmp.ne.s32.totalorder %s52, %s53
      %p65 = scmp.eq.s32.totalorder %s22, 1
      %p66 = por %p64, %p65
      %p68 = scmp.ne.s32.totalorder %s53, %s67
      %p69 = scmp.eq.s32.totalorder %s22, 0
      %p70 = por %p68, %p69
      %s72 = sadd.s32 %s71, 1
      %p75 = scmp.eq.s32.totalorder %s16, 1
      %p76 = scmp.ne.s32.totalorder %s71, %s73
      %p77 = scmp.eq.s32.totalorder %s16, 0
      %p78 = por %p76, %p77
      %p79 = scmp.ne.s32.totalorder %s71, %s73
      %p80 = scmp.eq.s32.totalorder %s21, 1
      %p81 = por %p79, %p80
      %p82 = scmp.ne.s32.totalorder %s73, %s74
      %p83 = scmp.eq.s32.totalorder %s21, 0
      %p84 = por %p82, %p83
      %p85 = scmp.ne.s32.totalorder %s73, %s74
      %p86 = scmp.eq.s32.totalorder %s22, 1
      %p87 = por %p85, %p86
      %p89 = scmp.ne.s32.totalorder %s74, %s88
      %p90 = scmp.eq.s32.totalorder %s22, 0
      %p91 = por %p89, %p90
      %s93 = sadd.s32 %s92, 1
      %p96 = scmp.eq.s32.totalorder %s16, 1
      %p97 = scmp.ne.s32.totalorder %s92, %s94
      %p98 = scmp.eq.s32.totalorder %s16, 0
      %p99 = por %p97, %p98
      %p100 = scmp.ne.s32.totalorder %s92, %s94
      %p101 = scmp.eq.s32.totalorder %s21, 1
      %p102 = por %p100, %p101
      %p103 = scmp.ne.s32.totalorder %s94, %s95
      %p104 = scmp.eq.s32.totalorder %s21, 0
      %p105 = por %p103, %p104
      %p106 = scmp.ne.s32.totalorder %s94, %s95
      %p107 = scmp.eq.s32.totalorder %s22, 1
      %p108 = por %p106, %p107
      %p110 = scmp.ne.s32.totalorder %s95, %s109
      %p111 = scmp.eq.s32.totalorder %s22, 0
      %p112 = por %p110, %p111
      %s114 = sadd.s32 %s113, 1
      %p117 = scmp.eq.s32.totalorder %s16, 1
      %p118 = scmp.ne.s32.totalorder %s113, %s115
      %p119 = scmp.eq.s32.totalorder %s16, 0
      %p120 = por %p118, %p119
      %p121 = scmp.ne.s32.totalorder %s113, %s115
      %p122 = scmp.eq.s32.totalorder %s21, 1
      %p123 = por %p121, %p122
      %p124 = scmp.ne.s32.totalorder %s115, %s116
      %p125 = scmp.eq.s32.totalorder %s21, 0
      %p126 = por %p124, %p125
      %p127 = scmp.ne.s32.totalorder %s115, %s116
      %p128 = scmp.eq.s32.totalorder %s22, 1
      %p129 = por %p127, %p128
      %p131 = scmp.ne.s32.totalorder %s116, %s130
      %p132 = scmp.eq.s32.totalorder %s22, 0
      %p133 = por %p131, %p132
      %s135 = sadd.s32 %s134, 1
      %p138 = scmp.eq.s32.totalorder %s16, 1
      %p139 = scmp.ne.s32.totalorder %s134, %s136
      %p140 = scmp.eq.s32.totalorder %s16, 0
      %p141 = por %p139, %p140
      %p142 = scmp.ne.s32.totalorder %s134, %s136
      %p143 = scmp.eq.s32.totalorder %s21, 1
      %p144 = por %p142, %p143
      %p145 = scmp.ne.s32.totalorder %s136, %s137
      %p146 = scmp.eq.s32.totalorder %s21, 0
      %p147 = por %p145, %p146
      %p148 = scmp.ne.s32.totalorder %s136, %s137
      %p149 = scmp.eq.s32.totalorder %s22, 1
      %p150 = por %p148, %p149
      %p152 = scmp.ne.s32.totalorder %s137, %s151
      %p153 = scmp.eq.s32.totalorder %s22, 0
      %p154 = por %p152, %p153
      %s156 = sadd.s32 %s155, 1
      %p159 = scmp.eq.s32.totalorder %s16, 1
      %p160 = scmp.ne.s32.totalorder %s155, %s157
      %p161 = scmp.eq.s32.totalorder %s16, 0
      %p162 = por %p160, %p161
      %p163 = scmp.ne.s32.totalorder %s155, %s157
      %p164 = scmp.eq.s32.totalorder %s21, 1
      %p165 = por %p163, %p164
      %p166 = scmp.ne.s32.totalorder %s157, %s158
      %p167 = scmp.eq.s32.totalorder %s21, 0
      %p168 = por %p166, %p167
      %p169 = scmp.ne.s32.totalorder %s157, %s158
      %p170 = scmp.eq.s32.totalorder %s22, 1
      %p171 = por %p169, %p170
      %p173 = scmp.ne.s32.totalorder %s158, %s172
      %p174 = scmp.eq.s32.totalorder %s22, 0
      %p175 = por %p173, %p174
      %s176 = ssub.s32 %s16, %s23
      %p177 = scmp.eq.s32.totalorder %s176, 0
      %s179 = sadd.s32 %s178, 1
      %s180 = scalar_select %p177, %s178, %s179
      %p183 = pneg %p177
      %p184 = scmp.eq.s32.totalorder %s16, 1
      %p185 = por %p183, %p184
      %p186 = scmp.ne.s32.totalorder %s178, %s181
      %p187 = scmp.eq.s32.totalorder %s16, 0
      %p188 = por %p186, %p187
      %p189 = scmp.ne.s32.totalorder %s178, %s181
      %p190 = scmp.eq.s32.totalorder %s21, 1
      %p191 = por %p189, %p190
      %p192 = scmp.ne.s32.totalorder %s181, %s182
      %p193 = scmp.eq.s32.totalorder %s21, 0
      %p194 = por %p192, %p193
      %p195 = scmp.ne.s32.totalorder %s181, %s182
      %p196 = scmp.eq.s32.totalorder %s22, 1
      %p197 = por %p195, %p196
      %p199 = scmp.ne.s32.totalorder %s182, %s198
      %p200 = scmp.eq.s32.totalorder %s22, 0
      %p201 = por %p199, %p200
      %p202 = scmp.le.s32.totalorder 1, %s16
      %p203 = scmp.lt.s32.totalorder %s16, 3
      %p204 = pnand %p202, %p203
      %p205 = pneg %p204
      // Predicated region
      $region9: #{gpt2_block.3} parent=5 // pred_check
        _
      $region10: #{gpt2_block.3} parent=5 // pred_check_branch
        %207 = sbr.rel (%p204) target = $region12
      $region11: #{gpt2_block.3} parent=5 // pred_region
        %s208 = ssub.s32 %s16, 1
        // Predicated region
        $region13: #{gpt2_block.3} parent=11 // pred_check
          %p209 = pneg %p63
        $region14: #{gpt2_block.3} parent=11 // pred_check_branch
          %211 = sbr.rel (%p209) target = $region16
        $region15: #{gpt2_block.3} parent=11 // pred_region
          _
        $region16: #{gpt2_block.3} parent=11 // pred_fallthru
          _
        // Predicated region
        $region17: #{gpt2_block.3} parent=11 // pred_check
          %p212 = pneg %p84
        $region18: #{gpt2_block.3} parent=11 // pred_check_branch
          %214 = sbr.rel (%p212) target = $region20
        $region19: #{gpt2_block.3} parent=11 // pred_region
          _
        $region20: #{gpt2_block.3} parent=11 // pred_fallthru
          _
        // Predicated region
        $region21: #{gpt2_block.3} parent=11 // pred_check
          %p215 = pneg %p105
        $region22: #{gpt2_block.3} parent=11 // pred_check_branch
          %217 = sbr.rel (%p215) target = $region24
        $region23: #{gpt2_block.3} parent=11 // pred_region
          _
        $region24: #{gpt2_block.3} parent=11 // pred_fallthru
          _
        // Predicated region
        $region25: #{gpt2_block.3} parent=11 // pred_check
          %p218 = pneg %p126
        $region26: #{gpt2_block.3} parent=11 // pred_check_branch
          %220 = sbr.rel (%p218) target = $region28
        $region27: #{gpt2_block.3} parent=11 // pred_region
          _
        $region28: #{gpt2_block.3} parent=11 // pred_fallthru
          _
        // Predicated region
        $region29: #{gpt2_block.3} parent=11 // pred_check
          %p221 = pneg %p147
        $region30: #{gpt2_block.3} parent=11 // pred_check_branch
          %223 = sbr.rel (%p221) target = $region32
        $region31: #{gpt2_block.3} parent=11 // pred_region
          _
        $region32: #{gpt2_block.3} parent=11 // pred_fallthru
          _
        // Predicated region
        $region33: #{gpt2_block.3} parent=11 // pred_check
          %p224 = pneg %p168
        $region34: #{gpt2_block.3} parent=11 // pred_check_branch
          %226 = sbr.rel (%p224) target = $region36
        $region35: #{gpt2_block.3} parent=11 // pred_region
          _
        $region36: #{gpt2_block.3} parent=11 // pred_fallthru
          _
      $region12: #{gpt2_block.3} parent=5 // pred_fallthru
        _
      %p227 = scmp.lt.s32.totalorder %s16, 2
      // Predicated region
      $region37: #{gpt2_block.3} parent=5 // pred_check
        %p228 = pneg %p227
      $region38: #{gpt2_block.3} parent=5 // pred_check_branch
        %230 = sbr.rel (%p228) target = $region40
      $region39: #{gpt2_block.3} parent=5 // pred_region
        // Predicated region
        $region41: #{gpt2_block.3} parent=39 // pred_check
          %p231 = pneg %p36
        $region42: #{gpt2_block.3} parent=39 // pred_check_branch
          %233 = sbr.rel (%p231) target = $region44
        $region43: #{gpt2_block.3} parent=39 // pred_region
          %p234 = scmp.lt.s32.totalorder %s16, 1
          %s235 = scalar_select %p234, %s16, 1
          %s236 = smul.addr %s235, 8
          %s237 = scalar_lea.vmem %s0, %s236
        $region44: #{gpt2_block.3} parent=39 // pred_fallthru
          _
      $region40: #{gpt2_block.3} parent=5 // pred_fallthru
        _
      %p238 = scmp.le.s32.totalorder 1, %s16
      %p239 = scmp.lt.s32.totalorder %s16, 3
      %p240 = pnand %p238, %p239
      %p241 = pneg %p240
      // Predicated region
      $region45: #{gpt2_block.3} parent=5 // pred_check
        _
      $region46: #{gpt2_block.3} parent=5 // pred_check_branch
        %243 = sbr.rel (%p240) target = $region48
      $region47: #{gpt2_block.3} parent=5 // pred_region
        %s244 = ssub.s32 %s16, 1
        %p245 = scmp.lt.s32.totalorder %s21, 1
        %s246 = scalar_select %p245, %s21, 1
        %s247 = smul.addr %s246, 8
        %s248 = scalar_lea.vmem %s0, %s247
        %p249 = pneg %p42
        %p250 = pneg %p39
        %p251 = pneg %p63
        %p252 = pneg %p60
        %p253 = pneg %p84
        %p254 = pneg %p81
        %p255 = pneg %p105
        %p256 = pneg %p102
        %p257 = pneg %p126
        %p258 = pneg %p123
        %p259 = pneg %p147
        %p260 = pneg %p144
        %p261 = pneg %p168
        %p262 = pneg %p165
        %p263 = pneg %p194
        %p264 = pneg %p191
        %s265 = sand.u32 %s181, 1
        %s266 = scalar_lea.sflag [#allocation3], %s265
        %s267 = sand.u32 %s181, 1
        %s268 = smul.addr %s267, 8
        %s269 = scalar_lea.vmem [#allocation2], %s268
        %p270 = scmp.lt.s32.totalorder %s21, 1
        %s271 = scalar_select %p270, %s21, 1
        %s272 = smul.addr %s271, 8
        %s273 = scalar_lea.vmem %s0, %s272
        %v274 = vld [vmem:[%s273] sm:$0xff]
        %v275 = vld [vmem:[%s1] sm:$0x1]
        %v276 = vld [vmem:[%s2] sm:$0x1]
        %vm277 = vcmask 261120
        %v278 = vsel %vm277, %v274, 0.0
        %279 = vadd.xlane.f32.xlu0 %v278
        %v280 = vpop.xlane.xlu0 %279
        %v281 = vrcp.pop 32.0
        %v282 = vmul.f32 %v280, %v281
        %v283 = vsub.f32 %v274, %v282
        %v284 = vmul.f32 %v283, %v283
        %v285 = vsel %vm277, %v284, 0.0
        %286 = vadd.xlane.f32.xlu0 %v285
        %v287 = vpop.xlane.xlu0 %286
        %v288 = vmul.f32 %v287, %v281
        %v289 = vadd.f32 %v288, 1e-05
        %v290 = vrsqrt.pop %v289
        %v291 = vmul.f32 %v283, %v290
        %v293 = vlaneseq
        %v294 = vshrl.u32 %v293, 7
        %v295 = vsub.s32 0, %v294
        %v296 = vrot.slane %v275, %v295
        %v298 = vmul.f32 %v291, %v296
        %v300 = vlaneseq
        %v301 = vshrl.u32 %v300, 7
        %v302 = vsub.s32 0, %v301
        %v303 = vrot.slane %v276, %v302
        %v305 = vadd.f32 %v298, %v303
        %v306 = vld [vmem:[%s3] sm:$0xff]
        %v307 = vld [vmem:[%s3 + $0x8] sm:$0xff]
        %v308 = vld [vmem:[%s3 + $0x10] sm:$0xff]
        %v309 = vld [vmem:[%s3 + $0x18] sm:$0xff]
        %v310 = vld [vmem:[%s4] sm:$0x1]
        %v312 = vlaneseq
        %v313 = vshrl.u32 %v312, 7
        %v314 = vsub.s32 0, %v313
        %v315 = vrot.slane %v310, %v314
        %v318 = vsel %vm277, %v305, 0
        %320 = vmatprep.subr.mxu0 0.0
        %321 = vmatpush1.msra.mxu0 %v306
        %322 = vmatprep.subr.mxu0 0.0
        %323 = vmatpush1.msra.mxu0 %v307
        %324 = vmatprep.subr.mxu0 0.0
        %325 = vmatpush1.msra.mxu0 %v308
        %326 = vmatprep.subr.mxu0 0.0
        %327 = vmatpush1.msra.mxu0 %v309
        %328 = vmatprep.subr.mxu0 0.0
        %329 = vmatpush1.msra.mxu0 0.0
        %330 = vmatprep.subr.mxu0 0.0
        %331 = vmatpush1.msra.mxu0 0.0
        %332 = vmatprep.subr.mxu0 0.0
        %333 = vmatpush1.msra.mxu0 0.0
        %334 = vmatprep.subr.mxu0 0.0
        %335 = vmatpush1.msra.mxu0 0.0
        %336 = vmatprep.subr.mxu0 0.0
        %337 = vmatpush1.msra.mxu0 0.0
        %338 = vmatprep.subr.mxu0 0.0
        %339 = vmatpush1.msra.mxu0 0.0
        %340 = vmatprep.subr.mxu0 0.0
        %341 = vmatpush1.msra.mxu0 0.0
        %342 = vmatprep.subr.mxu0 0.0
        %343 = vmatpush1.msra.mxu0 0.0
        %344 = vmatprep.subr.mxu0 0.0
        %345 = vmatpush1.msra.mxu0 0.0
        %346 = vmatprep.subr.mxu0 0.0
        %347 = vmatpush1.msra.mxu0 0.0
        %348 = vmatprep.subr.mxu0 0.0
        %349 = vmatpush1.msra.mxu0 0.0
        %350 = vmatprep.subr.mxu0 0.0
        %351 = vmatpush1.msra.mxu0 0.0
        %352 = vmatprep.subr.mxu0 0.0
        %353 = vmatpush1.msra.mxu0 0.0
        %354 = vmatprep.subr.mxu0 0.0
        %355 = vmatpush1.msra.mxu0 0.0
        %356 = vmatprep.subr.mxu0 0.0
        %357 = vmatpush1.msra.mxu0 0.0
        %358 = vmatprep.subr.mxu0 0.0
        %359 = vmatpush1.msra.mxu0 0.0
        %360 = vmatprep.subr.mxu0 0.0
        %361 = vmatpush1.msra.mxu0 0.0
        %362 = vmatprep.subr.mxu0 0.0
        %363 = vmatpush1.msra.mxu0 0.0
        %364 = vmatprep.subr.mxu0 0.0
        %365 = vmatpush1.msra.mxu0 0.0
        %366 = vmatprep.subr.mxu0 0.0
        %367 = vmatpush1.msra.mxu0 0.0
        %368 = vmatprep.subr.mxu0 0.0
        %369 = vmatpush1.msra.mxu0 0.0
        %370 = vmatprep.subr.mxu0 0.0
        %371 = vmatpush1.msra.mxu0 0.0
        %372 = vmatprep.subr.mxu0 0.0
        %373 = vmatpush1.msra.mxu0 0.0
        %374 = vmatprep.subr.mxu0 0.0
        %375 = vmatpush1.msra.mxu0 0.0
        %376 = vmatprep.subr.mxu0 0.0
        %377 = vmatpush1.msra.mxu0 0.0
        %378 = vmatprep.subr.mxu0 0.0
        %379 = vmatpush1.msra.mxu0 0.0
        %380 = vmatprep.subr.mxu0 0.0
        %381 = vmatpush1.msra.mxu0 0.0
        %382 = vmatprep.subr.mxu0 0.0
        %383 = vmatpush1.msra.mxu0 0.0
        %384 = vmatprep.mubr.f32.mxu0 0.0
        %385 = vmatmul.mubr.f32.gmra.mrb[0].mxu0 %v318
        %v386 = vpop.f32.mrb[0].mxu0
        %v387 = vadd.f32 %v315, %v386
        %v388 = vpop.f32.mrb[0].mxu0
        %389 = vdwg.mxu0
        %v390 = vmul.f32 %v387, 0.5
        %v391 = vmul.f32 %v387, %v387
        %v392 = vmul.f32 %v391, %v387
        %v393 = vmul.f32 %v392, 0.044715
        %v394 = vadd.f32 %v387, %v393
        %v395 = vmul.f32 %v394, 0.7978845
        %v396 = vtanh.pop %v395
        %v397 = vadd.f32 %v396, 1.0
        %v398 = vmul.f32 %v390, %v397
        %v399 = vld [vmem:[%s5] sm:$0xff]
        %v400 = vld [vmem:[%s5 + $0x8] sm:$0xff]
        %v401 = vld [vmem:[%s5 + $0x10] sm:$0xff]
        %v402 = vld [vmem:[%s5 + $0x18] sm:$0xff]
        %v403 = vld [vmem:[%s5 + $0x20] sm:$0xff]
        %v404 = vld [vmem:[%s5 + $0x28] sm:$0xff]
        %v405 = vld [vmem:[%s5 + $0x30] sm:$0xff]
        %v406 = vld [vmem:[%s5 + $0x38] sm:$0xff]
        %v407 = vld [vmem:[%s5 + $0x40] sm:$0xff]
        %v408 = vld [vmem:[%s5 + $0x48] sm:$0xff]
        %v409 = vld [vmem:[%s5 + $0x50] sm:$0xff]
        %v410 = vld [vmem:[%s5 + $0x58] sm:$0xff]
        %v411 = vld [vmem:[%s5 + $0x60] sm:$0xff]
        %v412 = vld [vmem:[%s5 + $0x68] sm:$0xff]
        %v413 = vld [vmem:[%s5 + $0x70] sm:$0xff]
        %v414 = vld [vmem:[%s5 + $0x78] sm:$0xff]
        %v415 = vld [vmem:[%s6] sm:$0x1]
        %v417 = vlaneseq
        %v418 = vshrl.u32 %v417, 7
        %v419 = vsub.s32 0, %v418
        %v420 = vrot.slane %v415, %v419
        %422 = vmatprep.subr.mxu0 0.0
        %423 = vmatpush1.msra.mxu0 %v399
        %424 = vmatprep.subr.mxu0 0.0
        %425 = vmatpush1.msra.mxu0 %v400
        %426 = vmatprep.subr.mxu0 0.0
        %427 = vmatpush1.msra.mxu0 %v401
        %428 = vmatprep.subr.mxu0 0.0
        %429 = vmatpush1.msra.mxu0 %v402
        %430 = vmatprep.subr.mxu0 0.0
        %431 = vmatpush1.msra.mxu0 %v403
        %432 = vmatprep.subr.mxu0 0.0
        %433 = vmatpush1.msra.mxu0 %v404
        %434 = vmatprep.subr.mxu0 0.0
        %435 = vmatpush1.msra.mxu0 %v405
        %436 = vmatprep.subr.mxu0 0.0
        %437 = vmatpush1.msra.mxu0 %v406
        %438 = vmatprep.subr.mxu0 0.0
        %439 = vmatpush1.msra.mxu0 %v407
        %440 = vmatprep.subr.mxu0 0.0
        %441 = vmatpush1.msra.mxu0 %v408
        %442 = vmatprep.subr.mxu0 0.0
        %443 = vmatpush1.msra.mxu0 %v409
        %444 = vmatprep.subr.mxu0 0.0
        %445 = vmatpush1.msra.mxu0 %v410
        %446 = vmatprep.subr.mxu0 0.0
        %447 = vmatpush1.msra.mxu0 %v411
        %448 = vmatprep.subr.mxu0 0.0
        %449 = vmatpush1.msra.mxu0 %v412
        %450 = vmatprep.subr.mxu0 0.0
        %451 = vmatpush1.msra.mxu0 %v413
        %452 = vmatprep.subr.mxu0 0.0
        %453 = vmatpush1.msra.mxu0 %v414
        %454 = vmatprep.subr.mxu0 0.0
        %455 = vmatpush1.msra.mxu0 0.0
        %456 = vmatprep.subr.mxu0 0.0
        %457 = vmatpush1.msra.mxu0 0.0
        %458 = vmatprep.subr.mxu0 0.0
        %459 = vmatpush1.msra.mxu0 0.0
        %460 = vmatprep.subr.mxu0 0.0
        %461 = vmatpush1.msra.mxu0 0.0
        %462 = vmatprep.subr.mxu0 0.0
        %463 = vmatpush1.msra.mxu0 0.0
        %464 = vmatprep.subr.mxu0 0.0
        %465 = vmatpush1.msra.mxu0 0.0
        %466 = vmatprep.subr.mxu0 0.0
        %467 = vmatpush1.msra.mxu0 0.0
        %468 = vmatprep.subr.mxu0 0.0
        %469 = vmatpush1.msra.mxu0 0.0
        %470 = vmatprep.subr.mxu0 0.0
        %471 = vmatpush1.msra.mxu0 0.0
        %472 = vmatprep.subr.mxu0 0.0
        %473 = vmatpush1.msra.mxu0 0.0
        %474 = vmatprep.subr.mxu0 0.0
        %475 = vmatpush1.msra.mxu0 0.0
        %476 = vmatprep.subr.mxu0 0.0
        %477 = vmatpush1.msra.mxu0 0.0
        %478 = vmatprep.subr.mxu0 0.0
        %479 = vmatpush1.msra.mxu0 0.0
        %480 = vmatprep.subr.mxu0 0.0
        %481 = vmatpush1.msra.mxu0 0.0
        %482 = vmatprep.subr.mxu0 0.0
        %483 = vmatpush1.msra.mxu0 0.0
        %484 = vmatprep.subr.mxu0 0.0
        %485 = vmatpush1.msra.mxu0 0.0
        %486 = vmatprep.mubr.f32.mxu0 0.0
        %487 = vmatmul.mubr.f32.gmra.mrb[0].mxu0 %v398
        %v488 = vpop.f32.mrb[0].mxu0
        %v489 = vadd.f32 %v420, %v488
        %v490 = vpop.f32.mrb[0].mxu0
        %491 = vdwg.mxu0
        %v492 = vadd.f32 %v274, %v489
        %493 = vst.msk [vmem:[%s269] sm:$0xff] %vm277, %v492
        %s494 = sand.u32 %s181, 1
        %s495 = scalar_lea.sflag [#allocation3], %s494
        %s496 = sand.u32 %s181, 1
        %s497 = smul.addr %s496, 8
        %s498 = scalar_lea.vmem [#allocation2], %s497
        // Predicated region
        $region49: #{gpt2_block.3} parent=47 // pred_check
          %p499 = pneg %p191
        $region50: #{gpt2_block.3} parent=47 // pred_check_branch
          %501 = sbr.rel (%p499) target = $region52
        $region51: #{gpt2_block.3} parent=47 // pred_region
          %s503 = ssub.s32 128, 128
          %504 = vsyncadd %s495, %s503
          %s505 = smul.addr %s21, 128
          %s506 = scalar_lea.hbm %s7, %s505
          %s508 = sshll.u32 %s498, 4
          %s509 = int_to_ptr.vmem [resolvable:$true] %s508
          %511 = dma.vmem_to_hbm [thread:$0]  %s509, 128, %s506, %s495
        $region52: #{gpt2_block.3} parent=47 // pred_fallthru
          _
      $region48: #{gpt2_block.3} parent=5 // pred_fallthru
        _
      %p512 = scmp.le.s32.totalorder 2, %s16
      // Predicated region
      $region53: #{gpt2_block.3} parent=5 // pred_check
        %p513 = pneg %p512
      $region54: #{gpt2_block.3} parent=5 // pred_check_branch
        %515 = sbr.rel (%p513) target = $region56
      $region55: #{gpt2_block.3} parent=5 // pred_region
        %s516 = ssub.s32 %s16, 2
        // Predicated region
        $region57: #{gpt2_block.3} parent=55 // pred_check
          %p517 = pneg %p197
        $region58: #{gpt2_block.3} parent=55 // pred_check_branch
          %519 = sbr.rel (%p517) target = $region60
        $region59: #{gpt2_block.3} parent=55 // pred_region
          %s520 = sand.u32 %s182, 1
          %s521 = scalar_lea.sflag [#allocation3], %s520
          %s522 = sand.u32 %s182, 1
          %s523 = smul.addr %s522, 8
          %s524 = scalar_lea.vmem [#allocation2], %s523
          %525 = dma.done %s521, 128
        $region60: #{gpt2_block.3} parent=55 // pred_fallthru
          _
      $region56: #{gpt2_block.3} parent=5 // pred_fallthru
        _
    $region6: #{gpt2_block.3} parent=1 // loop_footer
      %s20 = sadd.s32 1, %s16
    $region7: #{gpt2_block.3} parent=1 // loop_footer_branch
      %15 = sbr.rel target = $region3
    $region8: #{gpt2_block.3} parent=1 // loop_exit
      _
    %526 = vsyncpa [#allocation3], 1
    %s527 = scalar_lea.sflag [#allocation3], 1
    %528 = vsyncpa %s527, 1

// kernel: gpt2_block.2
$region0: #{gpt2_block.2}
  #allocation0 [shape = 'u32[]', space=smem, size = 0x4, offset = 0x4, fixed_abs, tag = 'smem constant byte address 0x4 - core index']
  #allocation1 [shape = 'u32[144,128]{1,0:T(1,128)}', space=vmem, size = 0x12000, scoped, tag = 'internal scratch']
  %s0 = inlined_call_operand.hbm [shape: f32[2,8,32], index: 0, kind: input, shape index: {}]
  %s1 = inlined_call_operand.vmem [shape: f32[1,32], index: 1, kind: input, shape index: {}]
  %s2 = inlined_call_operand.vmem [shape: f32[1,32], index: 2, kind: input, shape index: {}]
  %s3 = inlined_call_operand.vmem [shape: f32[32,96], index: 3, kind: input, shape index: {}]
  %s4 = inlined_call_operand.vmem [shape: f32[1,96], index: 4, kind: input, shape index: {}]
  %s5 = inlined_call_operand.hbm [shape: f32[32,32], index: 5, kind: input, shape index: {}]
  %s6 = inlined_call_operand.vmem [shape: f32[1,32], index: 6, kind: input, shape index: {}]
  %s7 = inlined_call_operand.vmem [shape: f32[2,8,32], index: 7, kind: output, shape index: {}]
  %s8 = sld [smem:[#allocation0]]
  $region69: #{gpt2_block.2} parent=0
    _
  %s10 = ssub.s32 1, %s8
  %s11 = scalar_select 0, %s10, %s8
  $region1: #{gpt2_block.2} parent=0
    #allocation2 [shape = 'u8[8192]{0}', space=vmem, size = 0x2000, scoped, tag = 'input window, operand 0']
    #allocation3 [shape = 's32[2]{0}', space=sflag, size = 0x8, scoped, tag = 'scoped memory for gpt2_block.2']
    #allocation4 [shape = 'u8[16384]{0}', space=vmem, size = 0x4000, scoped, tag = 'input window, operand 5, single buffered']
    #allocation5 [shape = 's32[1]{0}', space=sflag, size = 0x4, scoped, tag = 'scoped memory for gpt2_block.2']
    %12 = vsyncpa [#allocation3], 0
    %s13 = scalar_lea.sflag [#allocation3], 1
    %14 = vsyncpa %s13, 0
    %15 = vsyncpa [#allocation5], 0
    loop: start=0, step=1, limit=4
    $region2: #{gpt2_block.2} parent=1 // loop_pre_header
      _
    $region3: #{gpt2_block.2} parent=1 // loop_header
      %s17 = sphi 0, %s21
      %p18 = scmp.ge.s32.totalorder %s17, 4
      %s27 = sphi 0, %s29
      %s30 = sphi 0, %s27
      %s31 = sphi 0, %s30
      %s47 = sphi 0, %s31
      %s51 = sphi 0, %s51
      %s53 = sphi 0, %s51
      %s54 = sphi 0, %s53
      %s68 = sphi 0, %s54
      %s72 = sphi 0, %s72
      %s74 = sphi 0, %s72
      %s75 = sphi 0, %s74
      %s89 = sphi 0, %s75
      %s93 = sphi 0, %s93
      %s95 = sphi 0, %s93
      %s96 = sphi 0, %s95
      %s110 = sphi 0, %s96
      %s114 = sphi 0, %s114
      %s116 = sphi 0, %s114
      %s117 = sphi 0, %s116
      %s131 = sphi 0, %s117
      %s135 = sphi 0, %s135
      %s137 = sphi 0, %s135
      %s138 = sphi 0, %s137
      %s152 = sphi 0, %s138
      %s156 = sphi 0, %s156
      %s158 = sphi 0, %s156
      %s159 = sphi 0, %s158
      %s173 = sphi 0, %s159
      %s179 = sphi 0, %s181
      %s182 = sphi 0, %s179
      %s183 = sphi 0, %s182
      %s199 = sphi 0, %s183
    $region4: #{gpt2_block.2} parent=1 // loop_header_branch
      %20 = sbr.rel (%p18) target = $region8
    $region5: #{gpt2_block.2} parent=1 // loop_body
      %s22 = ssub.s32 %s17, 1
      %s23 = ssub.s32 %s17, 2
      %s24 = sadd.s32 %s17, 1
      %s25 = ssub.s32 %s17, %s24
      %p26 = scmp.eq.s32.totalorder %s25, 0
      %s28 = sadd.s32 %s27, 1
      %s29 = scalar_select %p26, %s27, %s28
      %p32 = pneg %p26
      %p33 = scmp.eq.s32.totalorder %s17, 1
      %p34 = por %p32, %p33
      %p35 = scmp.ne.s32.totalorder %s27, %s30
      %p36 = scmp.eq.s32.totalorder %s17, 0
      %p37 = por %p35, %p36
      %p38 = scmp.ne.s32.totalorder %s27, %s30
      %p39 = scmp.eq.s32.totalorder %s22, 1
      %p40 = por %p38, %p39
      %p41 = scmp.ne.s32.totalorder %s30, %s31
      %p42 = scmp.eq.s32.totalorder %s22, 0
      %p43 = por %p41, %p42
      %p44 = scmp.ne.s32.totalorder %s30, %s31
      %p45 = scmp.eq.s32.totalorder %s23, 1
      %p46 = por %p44, %p45
      %p48 = scmp.ne.s32.totalorder %s31, %s47
      %p49 = scmp.eq.s32.totalorder %s23, 0
      %p50 = por %p48, %p49
      %s52 = sadd.s32 %s51, 1
      %p55 = scmp.eq.s32.totalorder %s17, 1
      %p56 = scmp.ne.s32.totalorder %s51, %s53
      %p57 = scmp.eq.s32.totalorder %s17, 0
      %p58 = por %p56, %p57
      %p59 = scmp.ne.s32.totalorder %s51, %s53
      %p60 = scmp.eq.s32.totalorder %s22, 1
      %p61 = por %p59, %p60
      %p62 = scmp.ne.s32.totalorder %s53, %s54
      %p63 = scmp.eq.s32.totalorder %s22, 0
      %p64 = por %p62, %p63
      %p65 = scmp.ne.s32.totalorder %s53, %s54
      %p66 = scmp.eq.s32.totalorder %s23, 1
      %p67 = por %p65, %p66
      %p69 = scmp.ne.s32.totalorder %s54, %s68
      %p70 = scmp.eq.s32.totalorder %s23, 0
      %p71 = por %p69, %p70
      %s73 = sadd.s32 %s72, 1
      %p76 = scmp.eq.s32.totalorder %s17, 1
      %p77 = scmp.ne.s32.totalorder %s72, %s74
      %p78 = scmp.eq.s32.totalorder %s17, 0
      %p79 = por %p77, %p78
      %p80 = scmp.ne.s32.totalorder %s72, %s74
      %p81 = scmp.eq.s32.totalorder %s22, 1
      %p82 = por %p80, %p81
      %p83 = scmp.ne.s32.totalorder %s74, %s75
      %p84 = scmp.eq.s32.totalorder %s22, 0
      %p85 = por %p83, %p84
      %p86 = scmp.ne.s32.totalorder %s74, %s75
      %p87 = scmp.eq.s32.totalorder %s23, 1
      %p88 = por %p86, %p87
      %p90 = scmp.ne.s32.totalorder %s75, %s89
      %p91 = scmp.eq.s32.totalorder %s23, 0
      %p92 = por %p90, %p91
      %s94 = sadd.s32 %s93, 1
      %p97 = scmp.eq.s32.totalorder %s17, 1
      %p98 = scmp.ne.s32.totalorder %s93, %s95
      %p99 = scmp.eq.s32.totalorder %s17, 0
      %p100 = por %p98, %p99
      %p101 = scmp.ne.s32.totalorder %s93, %s95
      %p102 = scmp.eq.s32.totalorder %s22, 1
      %p103 = por %p101, %p102
      %p104 = scmp.ne.s32.totalorder %s95, %s96
      %p105 = scmp.eq.s32.totalorder %s22, 0
      %p106 = por %p104, %p105
      %p107 = scmp.ne.s32.totalorder %s95, %s96
      %p108 = scmp.eq.s32.totalorder %s23, 1
      %p109 = por %p107, %p108
      %p111 = scmp.ne.s32.totalorder %s96, %s110
      %p112 = scmp.eq.s32.totalorder %s23, 0
      %p113 = por %p111, %p112
      %s115 = sadd.s32 %s114, 1
      %p118 = scmp.eq.s32.totalorder %s17, 1
      %p119 = scmp.ne.s32.totalorder %s114, %s116
      %p120 = scmp.eq.s32.totalorder %s17, 0
      %p121 = por %p119, %p120
      %p122 = scmp.ne.s32.totalorder %s114, %s116
      %p123 = scmp.eq.s32.totalorder %s22, 1
      %p124 = por %p122, %p123
      %p125 = scmp.ne.s32.totalorder %s116, %s117
      %p126 = scmp.eq.s32.totalorder %s22, 0
      %p127 = por %p125, %p126
      %p128 = scmp.ne.s32.totalorder %s116, %s117
      %p129 = scmp.eq.s32.totalorder %s23, 1
      %p130 = por %p128, %p129
      %p132 = scmp.ne.s32.totalorder %s117, %s131
      %p133 = scmp.eq.s32.totalorder %s23, 0
      %p134 = por %p132, %p133
      %s136 = sadd.s32 %s135, 1
      %p139 = scmp.eq.s32.totalorder %s17, 1
      %p140 = scmp.ne.s32.totalorder %s135, %s137
      %p141 = scmp.eq.s32.totalorder %s17, 0
      %p142 = por %p140, %p141
      %p143 = scmp.ne.s32.totalorder %s135, %s137
      %p144 = scmp.eq.s32.totalorder %s22, 1
      %p145 = por %p143, %p144
      %p146 = scmp.ne.s32.totalorder %s137, %s138
      %p147 = scmp.eq.s32.totalorder %s22, 0
      %p148 = por %p146, %p147
      %p149 = scmp.ne.s32.totalorder %s137, %s138
      %p150 = scmp.eq.s32.totalorder %s23, 1
      %p151 = por %p149, %p150
      %p153 = scmp.ne.s32.totalorder %s138, %s152
      %p154 = scmp.eq.s32.totalorder %s23, 0
      %p155 = por %p153, %p154
      %s157 = sadd.s32 %s156, 1
      %p160 = scmp.eq.s32.totalorder %s17, 1
      %p161 = scmp.ne.s32.totalorder %s156, %s158
      %p162 = scmp.eq.s32.totalorder %s17, 0
      %p163 = por %p161, %p162
      %p164 = scmp.ne.s32.totalorder %s156, %s158
      %p165 = scmp.eq.s32.totalorder %s22, 1
      %p166 = por %p164, %p165
      %p167 = scmp.ne.s32.totalorder %s158, %s159
      %p168 = scmp.eq.s32.totalorder %s22, 0
      %p169 = por %p167, %p168
      %p170 = scmp.ne.s32.totalorder %s158, %s159
      %p171 = scmp.eq.s32.totalorder %s23, 1
      %p172 = por %p170, %p171
      %p174 = scmp.ne.s32.totalorder %s159, %s173
      %p175 = scmp.eq.s32.totalorder %s23, 0
      %p176 = por %p174, %p175
      %s177 = ssub.s32 %s17, %s24
      %p178 = scmp.eq.s32.totalorder %s177, 0
      %s180 = sadd.s32 %s179, 1
      %s181 = scalar_select %p178, %s179, %s180
      %p184 = pneg %p178
      %p185 = scmp.eq.s32.totalorder %s17, 1
      %p186 = por %p184, %p185
      %p187 = scmp.ne.s32.totalorder %s179, %s182
      %p188 = scmp.eq.s32.totalorder %s17, 0
      %p189 = por %p187, %p188
      %p190 = scmp.ne.s32.totalorder %s179, %s182
      %p191 = scmp.eq.s32.totalorder %s22, 1
      %p192 = por %p190, %p191
      %p193 = scmp.ne.s32.totalorder %s182, %s183
      %p194 = scmp.eq.s32.totalorder %s22, 0
      %p195 = por %p193, %p194
      %p196 = scmp.ne.s32.totalorder %s182, %s183
      %p197 = scmp.eq.s32.totalorder %s23, 1
      %p198 = por %p196, %p197
      %p200 = scmp.ne.s32.totalorder %s183, %s199
      %p201 = scmp.eq.s32.totalorder %s23, 0
      %p202 = por %p200, %p201
      %p203 = scmp.le.s32.totalorder 1, %s17
      %p204 = scmp.lt.s32.totalorder %s17, 3
      %p205 = pnand %p203, %p204
      %p206 = pneg %p205
      // Predicated region
      $region9: #{gpt2_block.2} parent=5 // pred_check
        _
      $region10: #{gpt2_block.2} parent=5 // pred_check_branch
        %208 = sbr.rel (%p205) target = $region12
      $region11: #{gpt2_block.2} parent=5 // pred_region
        %s209 = ssub.s32 %s17, 1
        // Predicated region
        $region13: #{gpt2_block.2} parent=11 // pred_check
          %p210 = pneg %p64
        $region14: #{gpt2_block.2} parent=11 // pred_check_branch
          %212 = sbr.rel (%p210) target = $region16
        $region15: #{gpt2_block.2} parent=11 // pred_region
          _
        $region16: #{gpt2_block.2} parent=11 // pred_fallthru
          _
        // Predicated region
        $region17: #{gpt2_block.2} parent=11 // pred_check
          %p213 = pneg %p85
        $region18: #{gpt2_block.2} parent=11 // pred_check_branch
          %215 = sbr.rel (%p213) target = $region20
        $region19: #{gpt2_block.2} parent=11 // pred_region
          _
        $region20: #{gpt2_block.2} parent=11 // pred_fallthru
          _
        // Predicated region
        $region21: #{gpt2_block.2} parent=11 // pred_check
          %p216 = pneg %p106
        $region22: #{gpt2_block.2} parent=11 // pred_check_branch
          %218 = sbr.rel (%p216) target = $region24
        $region23: #{gpt2_block.2} parent=11 // pred_region
          _
        $region24: #{gpt2_block.2} parent=11 // pred_fallthru
          _
        // Predicated region
        $region25: #{gpt2_block.2} parent=11 // pred_check
          %p219 = pneg %p127
        $region26: #{gpt2_block.2} parent=11 // pred_check_branch
          %221 = sbr.rel (%p219) target = $region28
        $region27: #{gpt2_block.2} parent=11 // pred_region
          _
        $region28: #{gpt2_block.2} parent=11 // pred_fallthru
          _
        // Predicated region
        $region29: #{gpt2_block.2} parent=11 // pred_check
          %p222 = pneg %p148
        $region30: #{gpt2_block.2} parent=11 // pred_check_branch
          %224 = sbr.rel (%p222) target = $region32
        $region31: #{gpt2_block.2} parent=11 // pred_region
          %s226 = ssub.s32 512, 512
          %227 = vsyncadd [#allocation5], %s226
          %s228 = sshll.u32 [#allocation4], 4
          %s229 = int_to_ptr.vmem [resolvable:$true] %s228
          %234 = dma.hbm_to_vmem [thread:$0]  %s5, 512, %s229, [#allocation5], 128, 128, 8
        $region32: #{gpt2_block.2} parent=11 // pred_fallthru
          _
        // Predicated region
        $region33: #{gpt2_block.2} parent=11 // pred_check
          %p235 = pneg %p169
        $region34: #{gpt2_block.2} parent=11 // pred_check_branch
          %237 = sbr.rel (%p235) target = $region36
        $region35: #{gpt2_block.2} parent=11 // pred_region
          _
        $region36: #{gpt2_block.2} parent=11 // pred_fallthru
          _
      $region12: #{gpt2_block.2} parent=5 // pred_fallthru
        _
      %p238 = scmp.lt.s32.totalorder %s17, 2
      // Predicated region
      $region37: #{gpt2_block.2} parent=5 // pred_check
        %p239 = pneg %p238
      $region38: #{gpt2_block.2} parent=5 // pred_check_branch
        %241 = sbr.rel (%p239) target = $region40
      $region39: #{gpt2_block.2} parent=5 // pred_region
        // Predicated region
        $region41: #{gpt2_block.2} parent=39 // pred_check
          %p242 = pneg %p37
        $region42: #{gpt2_block.2} parent=39 // pred_check_branch
          %244 = sbr.rel (%p242) target = $region44
        $region43: #{gpt2_block.2} parent=39 // pred_region
          %s245 = sand.u32 %s27, 1
          %s246 = scalar_lea.sflag [#allocation3], %s245
          %s247 = sand.u32 %s27, 1
          %s248 = smul.addr %s247, 8
          %s249 = scalar_lea.vmem [#allocation2], %s248
          %s251 = ssub.s32 128, 128
          %252 = vsyncadd %s246, %s251
          %s253 = smul.addr %s17, 128
          %s254 = scalar_lea.hbm %s0, %s253
          %s256 = sshll.u32 %s249, 4
          %s257 = int_to_ptr.vmem [resolvable:$true] %s256
          %259 = dma.hbm_to_vmem [thread:$0]  %s254, 128, %s257, %s246
        $region44: #{gpt2_block.2} parent=39 // pred_fallthru
          _
      $region40: #{gpt2_block.2} parent=5 // pred_fallthru
        _
      %p260 = scmp.le.s32.totalorder 1, %s17
      %p261 = scmp.lt.s32.totalorder %s17, 3
      %p262 = pnand %p260, %p261
      %p263 = pneg %p262
      // Predicated region
      $region45: #{gpt2_block.2} parent=5 // pred_check
        _
      $region46: #{gpt2_block.2} parent=5 // pred_check_branch
        %265 = sbr.rel (%p262) target = $region48
      $region47: #{gpt2_block.2} parent=5 // pred_region
        %s266 = ssub.s32 %s17, 1
        %s267 = sand.u32 %s30, 1
        %s268 = scalar_lea.sflag [#allocation3], %s267
        %s269 = sand.u32 %s30, 1
        %s270 = smul.addr %s269, 8
        %s271 = scalar_lea.vmem [#allocation2], %s270
        // Predicated region
        $region49: #{gpt2_block.2} parent=47 // pred_check
          %p272 = pneg %p43
        $region50: #{gpt2_block.2} parent=47 // pred_check_branch
          %274 = sbr.rel (%p272) target = $region52
        $region51: #{gpt2_block.2} parent=47 // pred_region
          %275 = dma.done %s268, 128
        $region52: #{gpt2_block.2} parent=47 // pred_fallthru
          _
        // Predicated region
        $region53: #{gpt2_block.2} parent=47 // pred_check
          %p276 = pneg %p148
        $region54: #{gpt2_block.2} parent=47 // pred_check_branch
          %278 = sbr.rel (%p276) target = $region56
        $region55: #{gpt2_block.2} parent=47 // pred_region
          %279 = dma.done [#allocation5], 512
        $region56: #{gpt2_block.2} parent=47 // pred_fallthru
          _
        %s280 = sand.u32 %s30, 1
        %s281 = scalar_lea.sflag [#allocation3], %s280
        %s282 = sand.u32 %s30, 1
        %s283 = smul.addr %s282, 8
        %s284 = scalar_lea.vmem [#allocation2], %s283
        %p285 = pneg %p43
        %p286 = pneg %p40
        %p287 = pneg %p64
        %p288 = pneg %p61
        %p289 = pneg %p85
        %p290 = pneg %p82
        %p291 = pneg %p106
        %p292 = pneg %p103
        %p293 = pneg %p127
        %p294 = pneg %p124
        %p295 = pneg %p148
        %p296 = pneg %p145
        %p297 = pneg %p169
        %p298 = pneg %p166
        %p299 = pneg %p195
        %p300 = pneg %p192
        %p301 = scmp.lt.s32.totalorder %s22, 1
        %s302 = scalar_select %p301, %s22, 1
        %s303 = smul.addr %s302, 8
        %s304 = scalar_lea.vmem %s7, %s303
        %p305 = scmp.lt.s32.totalorder %s22, 1
        %s306 = scalar_select %p305, %s22, 1
        %s307 = smul.addr %s306, 8
        %s308 = scalar_lea.vmem %s7, %s307
        %v309 = vld [vmem:[%s271] sm:$0xff]
        %v310 = vld [vmem:[%s1] sm:$0x1]
        %v311 = vld [vmem:[%s2] sm:$0x1]
        %vm312 = vcmask 261120
        %v313 = vsel %vm312, %v309, 0.0
        %314 = vadd.xlane.f32.xlu0 %v313
        %v315 = vpop.xlane.xlu0 %314
        %v316 = vrcp.pop 32.0
        %v317 = vmul.f32 %v315, %v316
        %v318 = vsub.f32 %v309, %v317
        %v319 = vmul.f32 %v318, %v318
        %v320 = vsel %vm312, %v319, 0.0
        %321 = vadd.xlane.f32.xlu0 %v320
        %v322 = vpop.xlane.xlu0 %321
        %v323 = vmul.f32 %v322, %v316
        %v324 = vadd.f32 %v323, 1e-05
        %v325 = vrsqrt.pop %v324
        %v326 = vmul.f32 %v318, %v325
        %v328 = vlaneseq
        %v329 = vshrl.u32 %v328, 7
        %v330 = vsub.s32 0, %v329
        %v331 = vrot.slane %v310, %v330
        %v333 = vmul.f32 %v326, %v331
        %v335 = vlaneseq
        %v336 = vshrl.u32 %v335, 7
        %v337 = vsub.s32 0, %v336
        %v338 = vrot.slane %v311, %v337
        %v340 = vadd.f32 %v333, %v338
        %v341 = vld [vmem:[%s3] sm:$0xff]
        %v342 = vld [vmem:[%s3 + $0x8] sm:$0xff]
        %v343 = vld [vmem:[%s3 + $0x10] sm:$0xff]
        %v344 = vld [vmem:[%s3 + $0x18] sm:$0xff]
        %v345 = vld [vmem:[%s4] sm:$0x1]
        %v347 = vlaneseq
        %v348 = vshrl.u32 %v347, 7
        %v349 = vsub.s32 0, %v348
        %v350 = vrot.slane %v345, %v349
        %v353 = vsel %vm312, %v340, 0
        %355 = vmatprep.subr.mxu0 0.0
        %356 = vmatpush1.msra.mxu0 %v341
        %357 = vmatprep.subr.mxu0 0.0
        %358 = vmatpush1.msra.mxu0 %v342
        %359 = vmatprep.subr.mxu0 0.0
        %360 = vmatpush1.msra.mxu0 %v343
        %361 = vmatprep.subr.mxu0 0.0
        %362 = vmatpush1.msra.mxu0 %v344
        %363 = vmatprep.subr.mxu0 0.0
        %364 = vmatpush1.msra.mxu0 0.0
        %365 = vmatprep.subr.mxu0 0.0
        %366 = vmatpush1.msra.mxu0 0.0
        %367 = vmatprep.subr.mxu0 0.0
        %368 = vmatpush1.msra.mxu0 0.0
        %369 = vmatprep.subr.mxu0 0.0
        %370 = vmatpush1.msra.mxu0 0.0
        %371 = vmatprep.subr.mxu0 0.0
        %372 = vmatpush1.msra.mxu0 0.0
        %373 = vmatprep.subr.mxu0 0.0
        %374 = vmatpush1.msra.mxu0 0.0
        %375 = vmatprep.subr.mxu0 0.0
        %376 = vmatpush1.msra.mxu0 0.0
        %377 = vmatprep.subr.mxu0 0.0
        %378 = vmatpush1.msra.mxu0 0.0
        %379 = vmatprep.subr.mxu0 0.0
        %380 = vmatpush1.msra.mxu0 0.0
        %381 = vmatprep.subr.mxu0 0.0
        %382 = vmatpush1.msra.mxu0 0.0
        %383 = vmatprep.subr.mxu0 0.0
        %384 = vmatpush1.msra.mxu0 0.0
        %385 = vmatprep.subr.mxu0 0.0
        %386 = vmatpush1.msra.mxu0 0.0
        %387 = vmatprep.subr.mxu0 0.0
        %388 = vmatpush1.msra.mxu0 0.0
        %389 = vmatprep.subr.mxu0 0.0
        %390 = vmatpush1.msra.mxu0 0.0
        %391 = vmatprep.subr.mxu0 0.0
        %392 = vmatpush1.msra.mxu0 0.0
        %393 = vmatprep.subr.mxu0 0.0
        %394 = vmatpush1.msra.mxu0 0.0
        %395 = vmatprep.subr.mxu0 0.0
        %396 = vmatpush1.msra.mxu0 0.0
        %397 = vmatprep.subr.mxu0 0.0
        %398 = vmatpush1.msra.mxu0 0.0
        %399 = vmatprep.subr.mxu0 0.0
        %400 = vmatpush1.msra.mxu0 0.0
        %401 = vmatprep.subr.mxu0 0.0
        %402 = vmatpush1.msra.mxu0 0.0
        %403 = vmatprep.subr.mxu0 0.0
        %404 = vmatpush1.msra.mxu0 0.0
        %405 = vmatprep.subr.mxu0 0.0
        %406 = vmatpush1.msra.mxu0 0.0
        %407 = vmatprep.subr.mxu0 0.0
        %408 = vmatpush1.msra.mxu0 0.0
        %409 = vmatprep.subr.mxu0 0.0
        %410 = vmatpush1.msra.mxu0 0.0
        %411 = vmatprep.subr.mxu0 0.0
        %412 = vmatpush1.msra.mxu0 0.0
        %413 = vmatprep.subr.mxu0 0.0
        %414 = vmatpush1.msra.mxu0 0.0
        %415 = vmatprep.subr.mxu0 0.0
        %416 = vmatpush1.msra.mxu0 0.0
        %417 = vmatprep.subr.mxu0 0.0
        %418 = vmatpush1.msra.mxu0 0.0
        %419 = vmatprep.mubr.f32.mxu0 0.0
        %420 = vmatmul.mubr.f32.gmra.mrb[0].mxu0 %v353
        %v421 = vpop.f32.mrb[0].mxu0
        %v422 = vadd.f32 %v350, %v421
        %v423 = vpop.f32.mrb[0].mxu0
        %424 = vdwg.mxu0
        %v425 = vlaneseq
        %v426 = vshrl.u32 %v425, 7
        %v427 = vlaneseq
        %v428 = vand.u32 %v427, 127
        %vm429 = vcmp.le.s32.totalorder %v428, %v426
        %v430 = vld [vmem:[#allocation4] sm:$0xff]
        %v431 = vld [vmem:[#allocation4 + $0x8] sm:$0xff]
        %v432 = vld [vmem:[#allocation4 + $0x10] sm:$0xff]
        %v433 = vld [vmem:[#allocation4 + $0x18] sm:$0xff]
        %v434 = vmul.f32 %v422, 0.35355338
        %436 = vrot.lane.b32.xlu0 %v422, 96
        %v437 = vpop.permute.xlu0 %436
        %vm438 = vcmask 64512
        %v440 = vsel %vm438, %v434, 0
        %v442 = vsel %vm438, %v437, 0
        %444 = vmatprep.subr.mxu0 0.0
        %445 = vmatpush1.xpose.msra.mxu0 %v442
        %446 = vmatprep.subr.mxu0 0.0
        %447 = vmatpush1.xpose.msra.mxu0 0.0
        %448 = vmatprep.subr.mxu0 0.0
        %449 = vmatpush1.xpose.msra.mxu0 0.0
        %450 = vmatprep.subr.mxu0 0.0
        %451 = vmatpush1.xpose.msra.mxu0 0.0
        %452 = vmatprep.subr.mxu0 0.0
        %453 = vmatpush1.xpose.msra.mxu0 0.0
        %454 = vmatprep.subr.mxu0 0.0
        %455 = vmatpush1.xpose.msra.mxu0 0.0
        %456 = vmatprep.subr.mxu0 0.0
        %457 = vmatpush1.xpose.msra.mxu0 0.0
        %458 = vmatprep.subr.mxu0 0.0
        %459 = vmatpush1.xpose.msra.mxu0 0.0
        %460 = vmatprep.subr.mxu0 0.0
        %461 = vmatpush1.xpose.msra.mxu0 0.0
        %462 = vmatprep.subr.mxu0 0.0
        %463 = vmatpush1.xpose.msra.mxu0 0.0
        %464 = vmatprep.subr.mxu0 0.0
        %465 = vmatpush1.xpose.msra.mxu0 0.0
        %466 = vmatprep.subr.mxu0 0.0
        %467 = vmatpush1.xpose.msra.mxu0 0.0
        %468 = vmatprep.subr.mxu0 0.0
        %469 = vmatpush1.xpose.msra.mxu0 0.0
        %470 = vmatprep.subr.mxu0 0.0
        %471 = vmatpush1.xpose.msra.mxu0 0.0
        %472 = vmatprep.subr.mxu0 0.0
        %473 = vmatpush1.xpose.msra.mxu0 0.0
        %474 = vmatprep.subr.mxu0 0.0
        %475 = vmatpush1.xpose.msra.mxu0 0.0
        %476 = vmatprep.subr.mxu0 0.0
        %477 = vmatpush1.xpose.msra.mxu0 0.0
        %478 = vmatprep.subr.mxu0 0.0
        %479 = vmatpush1.xpose.msra.mxu0 0.0
        %480 = vmatprep.subr.mxu0 0.0
        %481 = vmatpush1.xpose.msra.mxu0 0.0
        %482 = vmatprep.subr.mxu0 0.0
        %483 = vmatpush1.xpose.msra.mxu0 0.0
        %484 = vmatprep.subr.mxu0 0.0
        %485 = vmatpush1.xpose.msra.mxu0 0.0
        %486 = vmatprep.subr.mxu0 0.0
        %487 = vmatpush1.xpose.msra.mxu0 0.0
        %488 = vmatprep.subr.mxu0 0.0
        %489 = vmatpush1.xpose.msra.mxu0 0.0
        %490 = vmatprep.subr.mxu0 0.0
        %491 = vmatpush1.xpose.msra.mxu0 0.0
        %492 = vmatprep.subr.mxu0 0.0
        %493 = vmatpush1.xpose.msra.mxu0 0.0
        %494 = vmatprep.subr.mxu0 0.0
        %495 = vmatpush1.xpose.msra.mxu0 0.0
        %496 = vmatprep.subr.mxu0 0.0
        %497 = vmatpush1.xpose.msra.mxu0 0.0
        %498 = vmatprep.subr.mxu0 0.0
        %499 = vmatpush1.xpose.msra.mxu0 0.0
        %500 = vmatprep.subr.mxu0 0.0
        %501 = vmatpush1.xpose.msra.mxu0 0.0
        %502 = vmatprep.subr.mxu0 0.0
        %503 = vmatpush1.xpose.msra.mxu0 0.0
        %504 = vmatprep.subr.mxu0 0.0
        %505 = vmatpush1.xpose.msra.mxu0 0.0
        %506 = vmatprep.subr.mxu0 0.0
        %507 = vmatpush1.xpose.msra.mxu0 0.0
        %508 = vmatprep.mubr.f32.mxu0 0.0
        %509 = vmatmul.mubr.f32.gmra.mrb[0].mxu0 %v440
        %v510 = vpop.f32.mrb[0].mxu0
        %v511 = vadd.f32 0.0, %v510
        %v512 = vpop.f32.mrb[0].mxu0
        %513 = vdwg.mxu0
        %v514 = vsel %vm429, %v511, -10000.0
        %v515 = vsel %vm438, %v514, -inf
        %516 = vmax.xlane.f32.xlu0 %v515
        %v517 = vpop.xlane.xlu0 %516
        %v518 = vsub.f32 %v514, %v517
        %v519 = vmul.f32 %v518, 1.442695
        %v520 = vpow.pop %v519
        %v521 = vsel %vm438, %v520, 0.0
        %522 = vadd.xlane.f32.xlu0 %v521
        %v523 = vpop.xlane.xlu0 %522
        %v524 = vrcp.pop %v523
        %v525 = vmul.f32 %v520, %v524
        %526 = vrot.lane.b32.xlu0 %v422, 64
        %v527 = vpop.permute.xlu0 %526
        %v530 = vsel %vm438, %v525, 0
        %532 = vmatprep.subr.mxu0 0.0
        %533 = vmatpush1.msra.mxu0 %v527
        %534 = vmatprep.subr.mxu0 0.0
        %535 = vmatpush1.msra.mxu0 0.0
        %536 = vmatprep.subr.mxu0 0.0
        %537 = vmatpush1.msra.mxu0 0.0
        %538 = vmatprep.subr.mxu0 0.0
        %539 = vmatpush1.msra.mxu0 0.0
        %540 = vmatprep.subr.mxu0 0.0
        %541 = vmatpush1.msra.mxu0 0.0
        %542 = vmatprep.subr.mxu0 0.0
        %543 = vmatpush1.msra.mxu0 0.0
        %544 = vmatprep.subr.mxu0 0.0
        %545 = vmatpush1.msra.mxu0 0.0
        %546 = vmatprep.subr.mxu0 0.0
        %547 = vmatpush1.msra.mxu0 0.0
        %548 = vmatprep.subr.mxu0 0.0
        %549 = vmatpush1.msra.mxu0 0.0
        %550 = vmatprep.subr.mxu0 0.0
        %551 = vmatpush1.msra.mxu0 0.0
        %552 = vmatprep.subr.mxu0 0.0
        %553 = vmatpush1.msra.mxu0 0.0
        %554 = vmatprep.subr.mxu0 0.0
        %555 = vmatpush1.msra.mxu0 0.0
        %556 = vmatprep.subr.mxu0 0.0
        %557 = vmatpush1.msra.mxu0 0.0
        %558 = vmatprep.subr.mxu0 0.0
        %559 = vmatpush1.msra.mxu0 0.0
        %560 = vmatprep.subr.mxu0 0.0
        %561 = vmatpush1.msra.mxu0 0.0
        %562 = vmatprep.subr.mxu0 0.0
        %563 = vmatpush1.msra.mxu0 0.0
        %564 = vmatprep.subr.mxu0 0.0
        %565 = vmatpush1.msra.mxu0 0.0
        %566 = vmatprep.subr.mxu0 0.0
        %567 = vmatpush1.msra.mxu0 0.0
        %568 = vmatprep.subr.mxu0 0.0
        %569 = vmatpush1.msra.mxu0 0.0
        %570 = vmatprep.subr.mxu0 0.0
        %571 = vmatpush1.msra.mxu0 0.0
        %572 = vmatprep.subr.mxu0 0.0
        %573 = vmatpush1.msra.mxu0 0.0
        %574 = vmatprep.subr.mxu0 0.0
        %575 = vmatpush1.msra.mxu0 0.0
        %576 = vmatprep.subr.mxu0 0.0
        %577 = vmatpush1.msra.mxu0 0.0
        %578 = vmatprep.subr.mxu0 0.0
        %579 = vmatpush1.msra.mxu0 0.0
        %580 = vmatprep.subr.mxu0 0.0
        %581 = vmatpush1.msra.mxu0 0.0
        %582 = vmatprep.subr.mxu0 0.0
        %583 = vmatpush1.msra.mxu0 0.0
        %584 = vmatprep.subr.mxu0 0.0
        %585 = vmatpush1.msra.mxu0 0.0
        %586 = vmatprep.subr.mxu0 0.0
        %587 = vmatpush1.msra.mxu0 0.0
        %588 = vmatprep.subr.mxu0 0.0
        %589 = vmatpush1.msra.mxu0 0.0
        %590 = vmatprep.subr.mxu0 0.0
        %591 = vmatpush1.msra.mxu0 0.0
        %592 = vmatprep.subr.mxu0 0.0
        %593 = vmatpush1.msra.mxu0 0.0
        %594 = vmatprep.subr.mxu0 0.0
        %595 = vmatpush1.msra.mxu0 0.0
        %596 = vmatprep.mubr.f32.mxu0 0.0
        %597 = vmatmul.mubr.f32.gmra.mrb[0].mxu0 %v530
        %v598 = vpop.f32.mrb[0].mxu0
        %v599 = vadd.f32 0.0, %v598
        %v600 = vpop.f32.mrb[0].mxu0
        %601 = vdwg.mxu0
        %602 = vrot.lane.b32.xlu0 %v434, 120
        %v603 = vpop.permute.xlu0 %602
        %604 = vrot.lane.b32.xlu0 %v422, 88
        %v605 = vpop.permute.xlu0 %604
        %v606 = vsel %vm438, %v603, 0
        %v608 = vsel %vm438, %v605, 0
        %610 = vmatprep.subr.mxu0 0.0
        %611 = vmatpush1.xpose.msra.mxu0 %v608
        %612 = vmatprep.subr.mxu0 0.0
        %613 = vmatpush1.xpose.msra.mxu0 0.0
        %614 = vmatprep.subr.mxu0 0.0
        %615 = vmatpush1.xpose.msra.mxu0 0.0
        %616 = vmatprep.subr.mxu0 0.0
        %617 = vmatpush1.xpose.msra.mxu0 0.0
        %618 = vmatprep.subr.mxu0 0.0
        %619 = vmatpush1.xpose.msra.mxu0 0.0
        %620 = vmatprep.subr.mxu0 0.0
        %621 = vmatpush1.xpose.msra.mxu0 0.0
        %622 = vmatprep.subr.mxu0 0.0
        %623 = vmatpush1.xpose.msra.mxu0 0.0
        %624 = vmatprep.subr.mxu0 0.0
        %625 = vmatpush1.xpose.msra.mxu0 0.0
        %626 = vmatprep.subr.mxu0 0.0
        %627 = vmatpush1.xpose.msra.mxu0 0.0
        %628 = vmatprep.subr.mxu0 0.0
        %629 = vmatpush1.xpose.msra.mxu0 0.0
        %630 = vmatprep.subr.mxu0 0.0
        %631 = vmatpush1.xpose.msra.mxu0 0.0
        %632 = vmatprep.subr.mxu0 0.0
        %633 = vmatpush1.xpose.msra.mxu0 0.0
        %634 = vmatprep.subr.mxu0 0.0
        %635 = vmatpush1.xpose.msra.mxu0 0.0
        %636 = vmatprep.subr.mxu0 0.0
        %637 = vmatpush1.xpose.msra.mxu0 0.0
        %638 = vmatprep.subr.mxu0 0.0
        %639 = vmatpush1.xpose.msra.mxu0 0.0
        %640 = vmatprep.subr.mxu0 0.0
        %641 = vmatpush1.xpose.msra.mxu0 0.0
        %642 = vmatprep.subr.mxu0 0.0
        %643 = vmatpush1.xpose.msra.mxu0 0.0
        %644 = vmatprep.subr.mxu0 0.0
        %645 = vmatpush1.xpose.msra.mxu0 0.0
        %646 = vmatprep.subr.mxu0 0.0
        %647 = vmatpush1.xpose.msra.mxu0 0.0
        %648 = vmatprep.subr.mxu0 0.0
        %649 = vmatpush1.xpose.msra.mxu0 0.0
        %650 = vmatprep.subr.mxu0 0.0
        %651 = vmatpush1.xpose.msra.mxu0 0.0
        %652 = vmatprep.subr.mxu0 0.0
        %653 = vmatpush1.xpose.msra.mxu0 0.0
        %654 = vmatprep.subr.mxu0 0.0
        %655 = vmatpush1.xpose.msra.mxu0 0.0
        %656 = vmatprep.subr.mxu0 0.0
        %657 = vmatpush1.xpose.msra.mxu0 0.0
        %658 = vmatprep.subr.mxu0 0.0
        %659 = vmatpush1.xpose.msra.mxu0 0.0
        %660 = vmatprep.subr.mxu0 0.0
        %661 = vmatpush1.xpose.msra.mxu0 0.0
        %662 = vmatprep.subr.mxu0 0.0
        %663 = vmatpush1.xpose.msra.mxu0 0.0
        %664 = vmatprep.subr.mxu0 0.0
        %665 = vmatpush1.xpose.msra.mxu0 0.0
        %666 = vmatprep.subr.mxu0 0.0
        %667 = vmatpush1.xpose.msra.mxu0 0.0
        %668 = vmatprep.subr.mxu0 0.0
        %669 = vmatpush1.xpose.msra.mxu0 0.0
        %670 = vmatprep.subr.mxu0 0.0
        %671 = vmatpush1.xpose.msra.mxu0 0.0
        %672 = vmatprep.subr.mxu0 0.0
        %673 = vmatpush1.xpose.msra.mxu0 0.0
        %674 = vmatprep.mubr.f32.mxu0 0.0
        %675 = vmatmul.mubr.f32.gmra.mrb[0].mxu0 %v606
        %v676 = vpop.f32.mrb[0].mxu0
        %v677 = vadd.f32 0.0, %v676
        %v678 = vpop.f32.mrb[0].mxu0
        %679 = vdwg.mxu0
        %v680 = vsel %vm429, %v677, -10000.0
        %v681 = vsel %vm438, %v680, -inf
        %682 = vmax.xlane.f32.xlu0 %v681
        %v683 = vpop.xlane.xlu0 %682
        %v684 = vsub.f32 %v680, %v683
        %v685 = vmul.f32 %v684, 1.442695
        %v686 = vpow.pop %v685
        %v687 = vsel %vm438, %v686, 0.0
        %688 = vadd.xlane.f32.xlu0 %v687
        %v689 = vpop.xlane.xlu0 %688
        %v690 = vrcp.pop %v689
        %v691 = vmul.f32 %v686, %v690
        %692 = vrot.lane.b32.xlu0 %v422, 56
        %v693 = vpop.permute.xlu0 %692
        %v696 = vsel %vm438, %v691, 0
        %698 = vmatprep.subr.mxu0 0.0
        %699 = vmatpush1.msra.mxu0 %v693
        %700 = vmatprep.subr.mxu0 0.0
        %701 = vmatpush1.msra.mxu0 0.0
        %702 = vmatprep.subr.mxu0 0.0
        %703 = vmatpush1.msra.mxu0 0.0
        %704 = vmatprep.subr.mxu0 0.0
        %705 = vmatpush1.msra.mxu0 0.0
        %706 = vmatprep.subr.mxu0 0.0
        %707 = vmatpush1.msra.mxu0 0.0
        %708 = vmatprep.subr.mxu0 0.0
        %709 = vmatpush1.msra.mxu0 0.0
        %710 = vmatprep.subr.mxu0 0.0
        %711 = vmatpush1.msra.mxu0 0.0
        %712 = vmatprep.subr.mxu0 0.0
        %713 = vmatpush1.msra.mxu0 0.0
        %714 = vmatprep.subr.mxu0 0.0
        %715 = vmatpush1.msra.mxu0 0.0
        %716 = vmatprep.subr.mxu0 0.0
        %717 = vmatpush1.msra.mxu0 0.0
        %718 = vmatprep.subr.mxu0 0.0
        %719 = vmatpush1.msra.mxu0 0.0
        %720 = vmatprep.subr.mxu0 0.0
        %721 = vmatpush1.msra.mxu0 0.0
        %722 = vmatprep.subr.mxu0 0.0
        %723 = vmatpush1.msra.mxu0 0.0
        %724 = vmatprep.subr.mxu0 0.0
        %725 = vmatpush1.msra.mxu0 0.0
        %726 = vmatprep.subr.mxu0 0.0
        %727 = vmatpush1.msra.mxu0 0.0
        %728 = vmatprep.subr.mxu0 0.0
        %729 = vmatpush1.msra.mxu0 0.0
        %730 = vmatprep.subr.mxu0 0.0
        %731 = vmatpush1.msra.mxu0 0.0
        %732 = vmatprep.subr.mxu0 0.0
        %733 = vmatpush1.msra.mxu0 0.0
        %734 = vmatprep.subr.mxu0 0.0
        %735 = vmatpush1.msra.mxu0 0.0
        %736 = vmatprep.subr.mxu0 0.0
        %737 = vmatpush1.msra.mxu0 0.0
        %738 = vmatprep.subr.mxu0 0.0
        %739 = vmatpush1.msra.mxu0 0.0
        %740 = vmatprep.subr.mxu0 0.0
        %741 = vmatpush1.msra.mxu0 0.0
        %742 = vmatprep.subr.mxu0 0.0
        %743 = vmatpush1.msra.mxu0 0.0
        %744 = vmatprep.subr.mxu0 0.0
        %745 = vmatpush1.msra.mxu0 0.0
        %746 = vmatprep.subr.mxu0 0.0
        %747 = vmatpush1.msra.mxu0 0.0
        %748 = vmatprep.subr.mxu0 0.0
        %749 = vmatpush1.msra.mxu0 0.0
        %750 = vmatprep.subr.mxu0 0.0
        %751 = vmatpush1.msra.mxu0 0.0
        %752 = vmatprep.subr.mxu0 0.0
        %753 = vmatpush1.msra.mxu0 0.0
        %754 = vmatprep.subr.mxu0 0.0
        %755 = vmatpush1.msra.mxu0 0.0
        %756 = vmatprep.subr.mxu0 0.0
        %757 = vmatpush1.msra.mxu0 0.0
        %758 = vmatprep.subr.mxu0 0.0
        %759 = vmatpush1.msra.mxu0 0.0
        %760 = vmatprep.subr.mxu0 0.0
        %761 = vmatpush1.msra.mxu0 0.0
        %762 = vmatprep.mubr.f32.mxu0 0.0
        %763 = vmatmul.mubr.f32.gmra.mrb[0].mxu0 %v696
        %v764 = vpop.f32.mrb[0].mxu0
        %v765 = vadd.f32 0.0, %v764
        %v766 = vpop.f32.mrb[0].mxu0
        %767 = vdwg.mxu0
        %v769 = vsel %vm438, %v765, 0
        %771 = vmatprep.subr.mxu0 0.0
        %772 = vmatpush1.msra.mxu0 %v431
        %773 = vmatprep.subr.mxu0 0.0
        %774 = vmatpush1.msra.mxu0 0.0
        %775 = vmatprep.subr.mxu0 0.0
        %776 = vmatpush1.msra.mxu0 0.0
        %777 = vmatprep.subr.mxu0 0.0
        %778 = vmatpush1.msra.mxu0 0.0
        %779 = vmatprep.subr.mxu0 0.0
        %780 = vmatpush1.msra.mxu0 0.0
        %781 = vmatprep.subr.mxu0 0.0
        %782 = vmatpush1.msra.mxu0 0.0
        %783 = vmatprep.subr.mxu0 0.0
        %784 = vmatpush1.msra.mxu0 0.0
        %785 = vmatprep.subr.mxu0 0.0
        %786 = vmatpush1.msra.mxu0 0.0
        %787 = vmatprep.subr.mxu0 0.0
        %788 = vmatpush1.msra.mxu0 0.0
        %789 = vmatprep.subr.mxu0 0.0
        %790 = vmatpush1.msra.mxu0 0.0
        %791 = vmatprep.subr.mxu0 0.0
        %792 = vmatpush1.msra.mxu0 0.0
        %793 = vmatprep.subr.mxu0 0.0
        %794 = vmatpush1.msra.mxu0 0.0
        %795 = vmatprep.subr.mxu0 0.0
        %796 = vmatpush1.msra.mxu0 0.0
        %797 = vmatprep.subr.mxu0 0.0
        %798 = vmatpush1.msra.mxu0 0.0
        %799 = vmatprep.subr.mxu0 0.0
        %800 = vmatpush1.msra.mxu0 0.0
        %801 = vmatprep.subr.mxu0 0.0
        %802 = vmatpush1.msra.mxu0 0.0
        %803 = vmatprep.subr.mxu0 0.0
        %804 = vmatpush1.msra.mxu0 0.0
        %805 = vmatprep.subr.mxu0 0.0
        %806 = vmatpush1.msra.mxu0 0.0
        %807 = vmatprep.subr.mxu0 0.0
        %808 = vmatpush1.msra.mxu0 0.0
        %809 = vmatprep.subr.mxu0 0.0
        %810 = vmatpush1.msra.mxu0 0.0
        %811 = vmatprep.subr.mxu0 0.0
        %812 = vmatpush1.msra.mxu0 0.0
        %813 = vmatprep.subr.mxu0 0.0
        %814 = vmatpush1.msra.mxu0 0.0
        %815 = vmatprep.subr.mxu0 0.0
        %816 = vmatpush1.msra.mxu0 0.0
        %817 = vmatprep.subr.mxu0 0.0
        %818 = vmatpush1.msra.mxu0 0.0
        %819 = vmatprep.subr.mxu0 0.0
        %820 = vmatpush1.msra.mxu0 0.0
        %821 = vmatprep.subr.mxu0 0.0
        %822 = vmatpush1.msra.mxu0 0.0
        %823 = vmatprep.subr.mxu0 0.0
        %824 = vmatpush1.msra.mxu0 0.0
        %825 = vmatprep.subr.mxu0 0.0
        %826 = vmatpush1.msra.mxu0 0.0
        %827 = vmatprep.subr.mxu0 0.0
        %828 = vmatpush1.msra.mxu0 0.0
        %829 = vmatprep.subr.mxu0 0.0
        %830 = vmatpush1.msra.mxu0 0.0
        %831 = vmatprep.subr.mxu0 0.0
        %832 = vmatpush1.msra.mxu0 0.0
        %833 = vmatprep.subr.mxu0 0.0
        %834 = vmatpush1.msra.mxu0 0.0
        %835 = vmatprep.mubr.f32.mxu0 0.0
        %836 = vmatmul.mubr.f32.gmra.mrb[0].mxu0 %v769
        %v837 = vpop.f32.mrb[0].mxu0
        %v838 = vadd.f32 0.0, %v837
        %v839 = vpop.f32.mrb[0].mxu0
        %840 = vdwg.mxu0
        %v842 = vsel %vm438, %v599, 0
        %844 = vmatprep.subr.mxu0 0.0
        %845 = vmatpush1.msra.mxu0 %v430
        %846 = vmatprep.subr.mxu0 0.0
        %847 = vmatpush1.msra.mxu0 0.0
        %848 = vmatprep.subr.mxu0 0.0
        %849 = vmatpush1.msra.mxu0 0.0
        %850 = vmatprep.subr.mxu0 0.0
        %851 = vmatpush1.msra.mxu0 0.0
        %852 = vmatprep.subr.mxu0 0.0
        %853 = vmatpush1.msra.mxu0 0.0
        %854 = vmatprep.subr.mxu0 0.0
        %855 = vmatpush1.msra.mxu0 0.0
        %856 = vmatprep.subr.mxu0 0.0
        %857 = vmatpush1.msra.mxu0 0.0
        %858 = vmatprep.subr.mxu0 0.0
        %859 = vmatpush1.msra.mxu0 0.0
        %860 = vmatprep.subr.mxu0 0.0
        %861 = vmatpush1.msra.mxu0 0.0
        %862 = vmatprep.subr.mxu0 0.0
        %863 = vmatpush1.msra.mxu0 0.0
        %864 = vmatprep.subr.mxu0 0.0
        %865 = vmatpush1.msra.mxu0 0.0
        %866 = vmatprep.subr.mxu0 0.0
        %867 = vmatpush1.msra.mxu0 0.0
        %868 = vmatprep.subr.mxu0 0.0
        %869 = vmatpush1.msra.mxu0 0.0
        %870 = vmatprep.subr.mxu0 0.0
        %871 = vmatpush1.msra.mxu0 0.0
        %872 = vmatprep.subr.mxu0 0.0
        %873 = vmatpush1.msra.mxu0 0.0
        %874 = vmatprep.subr.mxu0 0.0
        %875 = vmatpush1.msra.mxu0 0.0
        %876 = vmatprep.subr.mxu0 0.0
        %877 = vmatpush1.msra.mxu0 0.0
        %878 = vmatprep.subr.mxu0 0.0
        %879 = vmatpush1.msra.mxu0 0.0
        %880 = vmatprep.subr.mxu0 0.0
        %881 = vmatpush1.msra.mxu0 0.0
        %882 = vmatprep.subr.mxu0 0.0
        %883 = vmatpush1.msra.mxu0 0.0
        %884 = vmatprep.subr.mxu0 0.0
        %885 = vmatpush1.msra.mxu0 0.0
        %886 = vmatprep.subr.mxu0 0.0
        %887 = vmatpush1.msra.mxu0 0.0
        %888 = vmatprep.subr.mxu0 0.0
        %889 = vmatpush1.msra.mxu0 0.0
        %890 = vmatprep.subr.mxu0 0.0
        %891 = vmatpush1.msra.mxu0 0.0
        %892 = vmatprep.subr.mxu0 0.0
        %893 = vmatpush1.msra.mxu0 0.0
        %894 = vmatprep.subr.mxu0 0.0
        %895 = vmatpush1.msra.mxu0 0.0
        %896 = vmatprep.subr.mxu0 0.0
        %897 = vmatpush1.msra.mxu0 0.0
        %898 = vmatprep.subr.mxu0 0.0
        %899 = vmatpush1.msra.mxu0 0.0
        %900 = vmatprep.subr.mxu0 0.0
        %901 = vmatpush1.msra.mxu0 0.0
        %902 = vmatprep.subr.mxu0 0.0
        %903 = vmatpush1.msra.mxu0 0.0
        %904 = vmatprep.subr.mxu0 0.0
        %905 = vmatpush1.msra.mxu0 0.0
        %906 = vmatprep.subr.mxu0 0.0
        %907 = vmatpush1.msra.mxu0 0.0
        %908 = vmatprep.mubr.f32.mxu0 0.0
        %909 = vmatmul.mubr.f32.gmra.mrb[0].mxu0 %v842
        %v910 = vpop.f32.mrb[0].mxu0
        %v911 = vadd.f32 %v838, %v910
        %v912 = vpop.f32.mrb[0].mxu0
        %913 = vdwg.mxu0
        %914 = vrot.lane.b32.xlu0 %v434, 112
        %v915 = vpop.permute.xlu0 %914
        %916 = vrot.lane.b32.xlu0 %v422, 80
        %v917 = vpop.permute.xlu0 %916
        %v918 = vsel %vm438, %v915, 0
        %v920 = vsel %vm438, %v917, 0
        %922 = vmatprep.subr.mxu0 0.0
        %923 = vmatpush1.xpose.msra.mxu0 %v920
        %924 = vmatprep.subr.mxu0 0.0
        %925 = vmatpush1.xpose.msra.mxu0 0.0
        %926 = vmatprep.subr.mxu0 0.0
        %927 = vmatpush1.xpose.msra.mxu0 0.0
        %928 = vmatprep.subr.mxu0 0.0
        %929 = vmatpush1.xpose.msra.mxu0 0.0
        %930 = vmatprep.subr.mxu0 0.0
        %931 = vmatpush1.xpose.msra.mxu0 0.0
        %932 = vmatprep.subr.mxu0 0.0
        %933 = vmatpush1.xpose.msra.mxu0 0.0
        %934 = vmatprep.subr.mxu0 0.0
        %935 = vmatpush1.xpose.msra.mxu0 0.0
        %936 = vmatprep.subr.mxu0 0.0
        %937 = vmatpush1.xpose.msra.mxu0 0.0
        %938 = vmatprep.subr.mxu0 0.0
        %939 = vmatpush1.xpose.msra.mxu0 0.0
        %940 = vmatprep.subr.mxu0 0.0
        %941 = vmatpush1.xpose.msra.mxu0 0.0
        %942 = vmatprep.subr.mxu0 0.0
        %943 = vmatpush1.xpose.msra.mxu0 0.0
        %944 = vmatprep.subr.mxu0 0.0
        %945 = vmatpush1.xpose.msra.mxu0 0.0
        %946 = vmatprep.subr.mxu0 0.0
        %947 = vmatpush1.xpose.msra.mxu0 0.0
        %948 = vmatprep.subr.mxu0 0.0
        %949 = vmatpush1.xpose.msra.mxu0 0.0
        %950 = vmatprep.subr.mxu0 0.0
        %951 = vmatpush1.xpose.msra.mxu0 0.0
        %952 = vmatprep.subr.mxu0 0.0
        %953 = vmatpush1.xpose.msra.mxu0 0.0
        %954 = vmatprep.subr.mxu0 0.0
        %955 = vmatpush1.xpose.msra.mxu0 0.0
        %956 = vmatprep.subr.mxu0 0.0
        %957 = vmatpush1.xpose.msra.mxu0 0.0
        %958 = vmatprep.subr.mxu0 0.0
        %959 = vmatpush1.xpose.msra.mxu0 0.0
        %960 = vmatprep.subr.mxu0 0.0
        %961 = vmatpush1.xpose.msra.mxu0 0.0
        %962 = vmatprep.subr.mxu0 0.0
        %963 = vmatpush1.xpose.msra.mxu0 0.0
        %964 = vmatprep.subr.mxu0 0.0
        %965 = vmatpush1.xpose.msra.mxu0 0.0
        %966 = vmatprep.subr.mxu0 0.0
        %967 = vmatpush1.xpose.msra.mxu0 0.0
        %968 = vmatprep.subr.mxu0 0.0
        %969 = vmatpush1.xpose.msra.mxu0 0.0
        %970 = vmatprep.subr.mxu0 0.0
        %971 = vmatpush1.xpose.msra.mxu0 0.0
        %972 = vmatprep.subr.mxu0 0.0
        %973 = vmatpush1.xpose.msra.mxu0 0.0
        %974 = vmatprep.subr.mxu0 0.0
        %975 = vmatpush1.xpose.msra.mxu0 0.0
        %976 = vmatprep.subr.mxu0 0.0
        %977 = vmatpush1.xpose.msra.mxu0 0.0
        %978 = vmatprep.subr.mxu0 0.0
        %979 = vmatpush1.xpose.msra.mxu0 0.0
        %980 = vmatprep.subr.mxu0 0.0
        %981 = vmatpush1.xpose.msra.mxu0 0.0
        %982 = vmatprep.subr.mxu0 0.0
        %983 = vmatpush1.xpose.msra.mxu0 0.0
        %984 = vmatprep.subr.mxu0 0.0
        %985 = vmatpush1.xpose.msra.mxu0 0.0
        %986 = vmatprep.mubr.f32.mxu0 0.0
        %987 = vmatmul.mubr.f32.gmra.mrb[0].mxu0 %v918
        %v988 = vpop.f32.mrb[0].mxu0
        %v989 = vadd.f32 0.0, %v988
        %v990 = vpop.f32.mrb[0].mxu0
        %991 = vdwg.mxu0
        %v992 = vsel %vm429, %v989, -10000.0
        %v993 = vsel %vm438, %v992, -inf
        %994 = vmax.xlane.f32.xlu0 %v993
        %v995 = vpop.xlane.xlu0 %994
        %v996 = vsub.f32 %v992, %v995
        %v997 = vmul.f32 %v996, 1.442695
        %v998 = vpow.pop %v997
        %v999 = vsel %vm438, %v998, 0.0
        %1000 = vadd.xlane.f32.xlu0 %v999
        %v1001 = vpop.xlane.xlu0 %1000
        %v1002 = vrcp.pop %v1001
        %v1003 = vmul.f32 %v998, %v1002
        %1004 = vrot.lane.b32.xlu0 %v422, 48
        %v1005 = vpop.permute.xlu0 %1004
        %v1008 = vsel %vm438, %v1003, 0
        %1010 = vmatprep.subr.mxu0 0.0
        %1011 = vmatpush1.msra.mxu0 %v1005
        %1012 = vmatprep.subr.mxu0 0.0
        %1013 = vmatpush1.msra.mxu0 0.0
        %1014 = vmatprep.subr.mxu0 0.0
        %1015 = vmatpush1.msra.mxu0 0.0
        %1016 = vmatprep.subr.mxu0 0.0
        %1017 = vmatpush1.msra.mxu0 0.0
        %1018 = vmatprep.subr.mxu0 0.0
        %1019 = vmatpush1.msra.mxu0 0.0
        %1020 = vmatprep.subr.mxu0 0.0
        %1021 = vmatpush1.msra.mxu0 0.0
        %1022 = vmatprep.subr.mxu0 0.0
        %1023 = vmatpush1.msra.mxu0 0.0
        %1024 = vmatprep.subr.mxu0 0.0
        %1025 = vmatpush1.msra.mxu0 0.0
        %1026 = vmatprep.subr.mxu0 0.0
        %1027 = vmatpush1.msra.mxu0 0.0
        %1028 = vmatprep.subr.mxu0 0.0
        %1029 = vmatpush1.msra.mxu0 0.0
        %1030 = vmatprep.subr.mxu0 0.0
        %1031 = vmatpush1.msra.mxu0 0.0
        %1032 = vmatprep.subr.mxu0 0.0
        %1033 = vmatpush1.msra.mxu0 0.0
        %1034 = vmatprep.subr.mxu0 0.0
        %1035 = vmatpush1.msra.mxu0 0.0
        %1036 = vmatprep.subr.mxu0 0.0
        %1037 = vmatpush1.msra.mxu0 0.0
        %1038 = vmatprep.subr.mxu0 0.0
        %1039 = vmatpush1.msra.mxu0 0.0
        %1040 = vmatprep.subr.mxu0 0.0
        %1041 = vmatpush1.msra.mxu0 0.0
        %1042 = vmatprep.subr.mxu0 0.0
        %1043 = vmatpush1.msra.mxu0 0.0
        %1044 = vmatprep.subr.mxu0 0.0
        %1045 = vmatpush1.msra.mxu0 0.0
        %1046 = vmatprep.subr.mxu0 0.0
        %1047 = vmatpush1.msra.mxu0 0.0
        %1048 = vmatprep.subr.mxu0 0.0
        %1049 = vmatpush1.msra.mxu0 0.0
        %1050 = vmatprep.subr.mxu0 0.0
        %1051 = vmatpush1.msra.mxu0 0.0
        %1052 = vmatprep.subr.mxu0 0.0
        %1053 = vmatpush1.msra.mxu0 0.0
        %1054 = vmatprep.subr.mxu0 0.0
        %1055 = vmatpush1.msra.mxu0 0.0
        %1056 = vmatprep.subr.mxu0 0.0
        %1057 = vmatpush1.msra.mxu0 0.0
        %1058 = vmatprep.subr.mxu0 0.0
        %1059 = vmatpush1.msra.mxu0 0.0
        %1060 = vmatprep.subr.mxu0 0.0
        %1061 = vmatpush1.msra.mxu0 0.0
        %1062 = vmatprep.subr.mxu0 0.0
        %1063 = vmatpush1.msra.mxu0 0.0
        %1064 = vmatprep.subr.mxu0 0.0
        %1065 = vmatpush1.msra.mxu0 0.0
        %1066 = vmatprep.subr.mxu0 0.0
        %1067 = vmatpush1.msra.mxu0 0.0
        %1068 = vmatprep.subr.mxu0 0.0
        %1069 = vmatpush1.msra.mxu0 0.0
        %1070 = vmatprep.subr.mxu0 0.0
        %1071 = vmatpush1.msra.mxu0 0.0
        %1072 = vmatprep.subr.mxu0 0.0
        %1073 = vmatpush1.msra.mxu0 0.0
        %1074 = vmatprep.mubr.f32.mxu0 0.0
        %1075 = vmatmul.mubr.f32.gmra.mrb[0].mxu0 %v1008
        %v1076 = vpop.f32.mrb[0].mxu0
        %v1077 = vadd.f32 0.0, %v1076
        %v1078 = vpop.f32.mrb[0].mxu0
        %1079 = vdwg.mxu0
        %v1081 = vsel %vm438, %v1077, 0
        %1083 = vmatprep.subr.mxu0 0.0
        %1084 = vmatpush1.msra.mxu0 %v432
        %1085 = vmatprep.subr.mxu0 0.0
        %1086 = vmatpush1.msra.mxu0 0.0
        %1087 = vmatprep.subr.mxu0 0.0
        %1088 = vmatpush1.msra.mxu0 0.0
        %1089 = vmatprep.subr.mxu0 0.0
        %1090 = vmatpush1.msra.mxu0 0.0
        %1091 = vmatprep.subr.mxu0 0.0
        %1092 = vmatpush1.msra.mxu0 0.0
        %1093 = vmatprep.subr.mxu0 0.0
        %1094 = vmatpush1.msra.mxu0 0.0
        %1095 = vmatprep.subr.mxu0 0.0
        %1096 = vmatpush1.msra.mxu0 0.0
        %1097 = vmatprep.subr.mxu0 0.0
        %1098 = vmatpush1.msra.mxu0 0.0
        %1099 = vmatprep.subr.mxu0 0.0
        %1100 = vmatpush1.msra.mxu0 0.0
        %1101 = vmatprep.subr.mxu0 0.0
        %1102 = vmatpush1.msra.mxu0 0.0
        %1103 = vmatprep.subr.mxu0 0.0
        %1104 = vmatpush1.msra.mxu0 0.0
        %1105 = vmatprep.subr.mxu0 0.0
        %1106 = vmatpush1.msra.mxu0 0.0
        %1107 = vmatprep.subr.mxu0 0.0
        %1108 = vmatpush1.msra.mxu0 0.0
        %1109 = vmatprep.subr.mxu0 0.0
        %1110 = vmatpush1.msra.mxu0 0.0
        %1111 = vmatprep.subr.mxu0 0.0
        %1112 = vmatpush1.msra.mxu0 0.0
        %1113 = vmatprep.subr.mxu0 0.0
        %1114 = vmatpush1.msra.mxu0 0.0
        %1115 = vmatprep.subr.mxu0 0.0
        %1116 = vmatpush1.msra.mxu0 0.0
        %1117 = vmatprep.subr.mxu0 0.0
        %1118 = vmatpush1.msra.mxu0 0.0
        %1119 = vmatprep.subr.mxu0 0.0
        %1120 = vmatpush1.msra.mxu0 0.0
        %1121 = vmatprep.subr.mxu0 0.0
        %1122 = vmatpush1.msra.mxu0 0.0
        %1123 = vmatprep.subr.mxu0 0.0
        %1124 = vmatpush1.msra.mxu0 0.0
        %1125 = vmatprep.subr.mxu0 0.0
        %1126 = vmatpush1.msra.mxu0 0.0
        %1127 = vmatprep.subr.mxu0 0.0
        %1128 = vmatpush1.msra.mxu0 0.0
        %1129 = vmatprep.subr.mxu0 0.0
        %1130 = vmatpush1.msra.mxu0 0.0
        %1131 = vmatprep.subr.mxu0 0.0
        %1132 = vmatpush1.msra.mxu0 0.0
        %1133 = vmatprep.subr.mxu0 0.0
        %1134 = vmatpush1.msra.mxu0 0.0
        %1135 = vmatprep.subr.mxu0 0.0
        %1136 = vmatpush1.msra.mxu0 0.0
        %1137 = vmatprep.subr.mxu0 0.0
        %1138 = vmatpush1.msra.mxu0 0.0
        %1139 = vmatprep.subr.mxu0 0.0
        %1140 = vmatpush1.msra.mxu0 0.0
        %1141 = vmatprep.subr.mxu0 0.0
        %1142 = vmatpush1.msra.mxu0 0.0
        %1143 = vmatprep.subr.mxu0 0.0
        %1144 = vmatpush1.msra.mxu0 0.0
        %1145 = vmatprep.subr.mxu0 0.0
        %1146 = vmatpush1.msra.mxu0 0.0
        %1147 = vmatprep.mubr.f32.mxu0 0.0
        %1148 = vmatmul.mubr.f32.gmra.mrb[0].mxu0 %v1081
        %v1149 = vpop.f32.mrb[0].mxu0
        %v1150 = vadd.f32 0.0, %v1149
        %v1151 = vpop.f32.mrb[0].mxu0
        %1152 = vdwg.mxu0
        %v1153 = vadd.f32 %v911, %v1150
        %1154 = vrot.lane.b32.xlu0 %v434, 104
        %v1155 = vpop.permute.xlu0 %1154
        %1156 = vrot.lane.b32.xlu0 %v422, 72
        %v1157 = vpop.permute.xlu0 %1156
        %v1158 = vsel %vm438, %v1155, 0
        %v1160 = vsel %vm438, %v1157, 0
        %1162 = vmatprep.subr.mxu0 0.0
        %1163 = vmatpush1.xpose.msra.mxu0 %v1160
        %1164 = vmatprep.subr.mxu0 0.0
        %1165 = vmatpush1.xpose.msra.mxu0 0.0
        %1166 = vmatprep.subr.mxu0 0.0
        %1167 = vmatpush1.xpose.msra.mxu0 0.0
        %1168 = vmatprep.subr.mxu0 0.0
        %1169 = vmatpush1.xpose.msra.mxu0 0.0
        %1170 = vmatprep.subr.mxu0 0.0
        %1171 = vmatpush1.xpose.msra.mxu0 0.0
        %1172 = vmatprep.subr.mxu0 0.0
        %1173 = vmatpush1.xpose.msra.mxu0 0.0
        %1174 = vmatprep.subr.mxu0 0.0
        %1175 = vmatpush1.xpose.msra.mxu0 0.0
        %1176 = vmatprep.subr.mxu0 0.0
        %1177 = vmatpush1.xpose.msra.mxu0 0.0
        %1178 = vmatprep.subr.mxu0 0.0
        %1179 = vmatpush1.xpose.msra.mxu0 0.0
        %1180 = vmatprep.subr.mxu0 0.0
        %1181 = vmatpush1.xpose.msra.mxu0 0.0
        %1182 = vmatprep.subr.mxu0 0.0
        %1183 = vmatpush1.xpose.msra.mxu0 0.0
        %1184 = vmatprep.subr.mxu0 0.0
        %1185 = vmatpush1.xpose.msra.mxu0 0.0
        %1186 = vmatprep.subr.mxu0 0.0
        %1187 = vmatpush1.xpose.msra.mxu0 0.0
        %1188 = vmatprep.subr.mxu0 0.0
        %1189 = vmatpush1.xpose.msra.mxu0 0.0
        %1190 = vmatprep.subr.mxu0 0.0
        %1191 = vmatpush1.xpose.msra.mxu0 0.0
        %1192 = vmatprep.subr.mxu0 0.0
        %1193 = vmatpush1.xpose.msra.mxu0 0.0
        %1194 = vmatprep.subr.mxu0 0.0
        %1195 = vmatpush1.xpose.msra.mxu0 0.0
        %1196 = vmatprep.subr.mxu0 0.0
        %1197 = vmatpush1.xpose.msra.mxu0 0.0
        %1198 = vmatprep.subr.mxu0 0.0
        %1199 = vmatpush1.xpose.msra.mxu0 0.0
        %1200 = vmatprep.subr.mxu0 0.0
        %1201 = vmatpush1.xpose.msra.mxu0 0.0
        %1202 = vmatprep.subr.mxu0 0.0
        %1203 = vmatpush1.xpose.msra.mxu0 0.0
        %1204 = vmatprep.subr.mxu0 0.0
        %1205 = vmatpush1.xpose.msra.mxu0 0.0
        %1206 = vmatprep.subr.mxu0 0.0
        %1207 = vmatpush1.xpose.msra.mxu0 0.0
        %1208 = vmatprep.subr.mxu0 0.0
        %1209 = vmatpush1.xpose.msra.mxu0 0.0
        %1210 = vmatprep.subr.mxu0 0.0
        %1211 = vmatpush1.xpose.msra.mxu0 0.0
        %1212 = vmatprep.subr.mxu0 0.0
        %1213 = vmatpush1.xpose.msra.mxu0 0.0
        %1214 = vmatprep.subr.mxu0 0.0
        %1215 = vmatpush1.xpose.msra.mxu0 0.0
        %1216 = vmatprep.subr.mxu0 0.0
        %1217 = vmatpush1.xpose.msra.mxu0 0.0
        %1218 = vmatprep.subr.mxu0 0.0
        %1219 = vmatpush1.xpose.msra.mxu0 0.0
        %1220 = vmatprep.subr.mxu0 0.0
        %1221 = vmatpush1.xpose.msra.mxu0 0.0
        %1222 = vmatprep.subr.mxu0 0.0
        %1223 = vmatpush1.xpose.msra.mxu0 0.0
        %1224 = vmatprep.subr.mxu0 0.0
        %1225 = vmatpush1.xpose.msra.mxu0 0.0
        %1226 = vmatprep.mubr.f32.mxu0 0.0
        %1227 = vmatmul.mubr.f32.gmra.mrb[0].mxu0 %v1158
        %v1228 = vpop.f32.mrb[0].mxu0
        %v1229 = vadd.f32 0.0, %v1228
        %v1230 = vpop.f32.mrb[0].mxu0
        %1231 = vdwg.mxu0
        %v1232 = vsel %vm429, %v1229, -10000.0
        %v1233 = vsel %vm438, %v1232, -inf
        %1234 = vmax.xlane.f32.xlu0 %v1233
        %v1235 = vpop.xlane.xlu0 %1234
        %v1236 = vsub.f32 %v1232, %v1235
        %v1237 = vmul.f32 %v1236, 1.442695
        %v1238 = vpow.pop %v1237
        %v1239 = vsel %vm438, %v1238, 0.0
        %1240 = vadd.xlane.f32.xlu0 %v1239
        %v1241 = vpop.xlane.xlu0 %1240
        %v1242 = vrcp.pop %v1241
        %v1243 = vmul.f32 %v1238, %v1242
        %1244 = vrot.lane.b32.xlu0 %v422, 40
        %v1245 = vpop.permute.xlu0 %1244
        %v1248 = vsel %vm438, %v1243, 0
        %1250 = vmatprep.subr.mxu0 0.0
        %1251 = vmatpush1.msra.mxu0 %v1245
        %1252 = vmatprep.subr.mxu0 0.0
        %1253 = vmatpush1.msra.mxu0 0.0
        %1254 = vmatprep.subr.mxu0 0.0
        %1255 = vmatpush1.msra.mxu0 0.0
        %1256 = vmatprep.subr.mxu0 0.0
        %1257 = vmatpush1.msra.mxu0 0.0
        %1258 = vmatprep.subr.mxu0 0.0
        %1259 = vmatpush1.msra.mxu0 0.0
        %1260 = vmatprep.subr.mxu0 0.0
        %1261 = vmatpush1.msra.mxu0 0.0
        %1262 = vmatprep.subr.mxu0 0.0
        %1263 = vmatpush1.msra.mxu0 0.0
        %1264 = vmatprep.subr.mxu0 0.0
        %1265 = vmatpush1.msra.mxu0 0.0
        %1266 = vmatprep.subr.mxu0 0.0
        %1267 = vmatpush1.msra.mxu0 0.0
        %1268 = vmatprep.subr.mxu0 0.0
        %1269 = vmatpush1.msra.mxu0 0.0
        %1270 = vmatprep.subr.mxu0 0.0
        %1271 = vmatpush1.msra.mxu0 0.0
        %1272 = vmatprep.subr.mxu0 0.0
        %1273 = vmatpush1.msra.mxu0 0.0
        %1274 = vmatprep.subr.mxu0 0.0
        %1275 = vmatpush1.msra.mxu0 0.0
        %1276 = vmatprep.subr.mxu0 0.0
        %1277 = vmatpush1.msra.mxu0 0.0
        %1278 = vmatprep.subr.mxu0 0.0
        %1279 = vmatpush1.msra.mxu0 0.0
        %1280 = vmatprep.subr.mxu0 0.0
        %1281 = vmatpush1.msra.mxu0 0.0
        %1282 = vmatprep.subr.mxu0 0.0
        %1283 = vmatpush1.msra.mxu0 0.0
        %1284 = vmatprep.subr.mxu0 0.0
        %1285 = vmatpush1.msra.mxu0 0.0
        %1286 = vmatprep.subr.mxu0 0.0
        %1287 = vmatpush1.msra.mxu0 0.0
        %1288 = vmatprep.subr.mxu0 0.0
        %1289 = vmatpush1.msra.mxu0 0.0
        %1290 = vmatprep.subr.mxu0 0.0
        %1291 = vmatpush1.msra.mxu0 0.0
        %1292 = vmatprep.subr.mxu0 0.0
        %1293 = vmatpush1.msra.mxu0 0.0
        %1294 = vmatprep.subr.mxu0 0.0
        %1295 = vmatpush1.msra.mxu0 0.0
        %1296 = vmatprep.subr.mxu0 0.0
        %1297 = vmatpush1.msra.mxu0 0.0
        %1298 = vmatprep.subr.mxu0 0.0
        %1299 = vmatpush1.msra.mxu0 0.0
        %1300 = vmatprep.subr.mxu0 0.0
        %1301 = vmatpush1.msra.mxu0 0.0
        %1302 = vmatprep.subr.mxu0 0.0
        %1303 = vmatpush1.msra.mxu0 0.0
        %1304 = vmatprep.subr.mxu0 0.0
        %1305 = vmatpush1.msra.mxu0 0.0
        %1306 = vmatprep.subr.mxu0 0.0
        %1307 = vmatpush1.msra.mxu0 0.0
        %1308 = vmatprep.subr.mxu0 0.0
        %1309 = vmatpush1.msra.mxu0 0.0
        %1310 = vmatprep.subr.mxu0 0.0
        %1311 = vmatpush1.msra.mxu0 0.0
        %1312 = vmatprep.subr.mxu0 0.0
        %1313 = vmatpush1.msra.mxu0 0.0
        %1314 = vmatprep.mubr.f32.mxu0 0.0
        %1315 = vmatmul.mubr.f32.gmra.mrb[0].mxu0 %v1248
        %v1316 = vpop.f32.mrb[0].mxu0
        %v1317 = vadd.f32 0.0, %v1316
        %v1318 = vpop.f32.mrb[0].mxu0
        %1319 = vdwg.mxu0
        %v1321 = vsel %vm438, %v1317, 0
        %1323 = vmatprep.subr.mxu0 0.0
        %1324 = vmatpush1.msra.mxu0 %v433
        %1325 = vmatprep.subr.mxu0 0.0
        %1326 = vmatpush1.msra.mxu0 0.0
        %1327 = vmatprep.subr.mxu0 0.0
        %1328 = vmatpush1.msra.mxu0 0.0
        %1329 = vmatprep.subr.mxu0 0.0
        %1330 = vmatpush1.msra.mxu0 0.0
        %1331 = vmatprep.subr.mxu0 0.0
        %1332 = vmatpush1.msra.mxu0 0.0
        %1333 = vmatprep.subr.mxu0 0.0
        %1334 = vmatpush1.msra.mxu0 0.0
        %1335 = vmatprep.subr.mxu0 0.0
        %1336 = vmatpush1.msra.mxu0 0.0
        %1337 = vmatprep.subr.mxu0 0.0
        %1338 = vmatpush1.msra.mxu0 0.0
        %1339 = vmatprep.subr.mxu0 0.0
        %1340 = vmatpush1.msra.mxu0 0.0
        %1341 = vmatprep.subr.mxu0 0.0
        %1342 = vmatpush1.msra.mxu0 0.0
        %1343 = vmatprep.subr.mxu0 0.0
        %1344 = vmatpush1.msra.mxu0 0.0
        %1345 = vmatprep.subr.mxu0 0.0
        %1346 = vmatpush1.msra.mxu0 0.0
        %1347 = vmatprep.subr.mxu0 0.0
        %1348 = vmatpush1.msra.mxu0 0.0
        %1349 = vmatprep.subr.mxu0 0.0
        %1350 = vmatpush1.msra.mxu0 0.0
        %1351 = vmatprep.subr.mxu0 0.0
        %1352 = vmatpush1.msra.mxu0 0.0
        %1353 = vmatprep.subr.mxu0 0.0
        %1354 = vmatpush1.msra.mxu0 0.0
        %1355 = vmatprep.subr.mxu0 0.0
        %1356 = vmatpush1.msra.mxu0 0.0
        %1357 = vmatprep.subr.mxu0 0.0
        %1358 = vmatpush1.msra.mxu0 0.0
        %1359 = vmatprep.subr.mxu0 0.0
        %1360 = vmatpush1.msra.mxu0 0.0
        %1361 = vmatprep.subr.mxu0 0.0
        %1362 = vmatpush1.msra.mxu0 0.0
        %1363 = vmatprep.subr.mxu0 0.0
        %1364 = vmatpush1.msra.mxu0 0.0
        %1365 = vmatprep.subr.mxu0 0.0
        %1366 = vmatpush1.msra.mxu0 0.0
        %1367 = vmatprep.subr.mxu0 0.0
        %1368 = vmatpush1.msra.mxu0 0.0
        %1369 = vmatprep.subr.mxu0 0.0
        %1370 = vmatpush1.msra.mxu0 0.0
        %1371 = vmatprep.subr.mxu0 0.0
        %1372 = vmatpush1.msra.mxu0 0.0
        %1373 = vmatprep.subr.mxu0 0.0
        %1374 = vmatpush1.msra.mxu0 0.0
        %1375 = vmatprep.subr.mxu0 0.0
        %1376 = vmatpush1.msra.mxu0 0.0
        %1377 = vmatprep.subr.mxu0 0.0
        %1378 = vmatpush1.msra.mxu0 0.0
        %1379 = vmatprep.subr.mxu0 0.0
        %1380 = vmatpush1.msra.mxu0 0.0
        %1381 = vmatprep.subr.mxu0 0.0
        %1382 = vmatpush1.msra.mxu0 0.0
        %1383 = vmatprep.subr.mxu0 0.0
        %1384 = vmatpush1.msra.mxu0 0.0
        %1385 = vmatprep.subr.mxu0 0.0
        %1386 = vmatpush1.msra.mxu0 0.0
        %1387 = vmatprep.mubr.f32.mxu0 0.0
        %1388 = vmatmul.mubr.f32.gmra.mrb[0].mxu0 %v1321
        %v1389 = vpop.f32.mrb[0].mxu0
        %v1390 = vadd.f32 0.0, %v1389
        %v1391 = vpop.f32.mrb[0].mxu0
        %1392 = vdwg.mxu0
        %v1393 = vadd.f32 %v1153, %v1390
        %v1394 = vld [vmem:[%s6] sm:$0x1]
        %v1396 = vlaneseq
        %v1397 = vshrl.u32 %v1396, 7
        %v1398 = vsub.s32 0, %v1397
        %v1399 = vrot.slane %v1394, %v1398
        %v1401 = vadd.f32 %v1393, %v1399
        %v1402 = vadd.f32 %v309, %v1401
        %1403 = vst.msk [vmem:[%s308] sm:$0xff] %vm312, %v1402
        %p1404 = scmp.lt.s32.totalorder %s22, 1
        %s1405 = scalar_select %p1404, %s22, 1
        %s1406 = smul.addr %s1405, 8
        %s1407 = scalar_lea.vmem %s7, %s1406
        // Predicated region
        $region57: #{gpt2_block.2} parent=47 // pred_check
          %p1408 = pneg %p192
        $region58: #{gpt2_block.2} parent=47 // pred_check_branch
          %1410 = sbr.rel (%p1408) target = $region60
        $region59: #{gpt2_block.2} parent=47 // pred_region
          _
        $region60: #{gpt2_block.2} parent=47 // pred_fallthru
          _
      $region48: #{gpt2_block.2} parent=5 // pred_fallthru
        _
      %p1411 = scmp.le.s32.totalorder 2, %s17
      // Predicated region
      $region61: #{gpt2_block.2} parent=5 // pred_check
        %p1412 = pneg %p1411
      $region62: #{gpt2_block.2} parent=5 // pred_check_branch
        %1414 = sbr.rel (%p1412) target = $region64
      $region63: #{gpt2_block.2} parent=5 // pred_region
        %s1415 = ssub.s32 %s17, 2
        // Predicated region
        $region65: #{gpt2_block.2} parent=63 // pred_check
          %p1416 = pneg %p198
        $region66: #{gpt2_block.2} parent=63 // pred_check_branch
          %1418 = sbr.rel (%p1416) target = $region68
        $region67: #{gpt2_block.2} parent=63 // pred_region
          %p1419 = scmp.lt.s32.totalorder %s23, 1
          %s1420 = scalar_select %p1419, %s23, 1
          %s1421 = smul.addr %s1420, 8
          %s1422 = scalar_lea.vmem %s7, %s1421
        $region68: #{gpt2_block.2} parent=63 // pred_fallthru
          _
      $region64: #{gpt2_block.2} parent=5 // pred_fallthru
        _
    $region6: #{gpt2_block.2} parent=1 // loop_footer
      %s21 = sadd.s32 1, %s17
    $region7: #{gpt2_block.2} parent=1 // loop_footer_branch
      %16 = sbr.rel target = $region3
    $region8: #{gpt2_block.2} parent=1 // loop_exit
      _
    %1423 = vsyncpa [#allocation3], 1
    %s1424 = scalar_lea.sflag [#allocation3], 1
    %1425 = vsyncpa %s1424, 1
    %1426 = vsyncpa [#allocation5], 1

</llo_original>
